<compile_context>
chip_gen: v7x
topology: tpu7x:2x2x1
jax: 0.10.0
libtpu: 0.0.40
codegen_flags: <defaults>
</compile_context>

<pallas_src>
import functools

import jax
import jax.numpy as jnp
import numpy as np
from jax.experimental import pallas as pl
from jax.experimental.pallas import tpu as pltpu


def _classifier_kernel(x_ref, wc_ref, bc_ref, wf_ref, bf_ref, o_ref,
                       patch_ref, *, h, w, c_in, kh, kw):
    # x_ref    : (1, H+2, W+2, C_in)   f32   padded NHWC image
    # wc_ref   : (kh*kw*C_in, C_PAD)   bf16  conv weight (C_out zero-padded)
    # bc_ref   : (1, C_PAD)            f32   conv bias (zero-padded)
    # wf_ref   : (C_PAD, NCLS_PAD)     f32   fc weight, pre-scaled by 1/(H*W)
    # bf_ref   : (1, NCLS_PAD)         f32   fc bias (zero-padded)
    # o_ref    : (1, 1, NCLS_PAD)      f32   logits for this image
    # patch_ref: VMEM (H, W, kh*kw*C_in) f32  im2col patch matrix (in-VMEM)

    # Build the patch matrix once per image: 9 shifted-window copies (static
    # slices; the kj shift is a sublane-offset load, the tap placement a
    # masked lane store).  This replaces nine separate K=C_in matmuls.
    for ki in range(kh):
        for kj in range(kw):
            t = ki * kw + kj
            patch_ref[:, :, t * c_in:(t + 1) * c_in] = \
                x_ref[0, ki:ki + h, kj:kj + w, :]

    c_pad = wc_ref.shape[1]

    # Single MXU matmul per image: (H, W, kh*kw*C_in) x (kh*kw*C_in, C_PAD),
    # bf16 operands, f32 accumulation.  Effective M = H*W = 256.
    acc = jax.lax.dot_general(
        patch_ref[...].astype(jnp.bfloat16), wc_ref[...],
        dimension_numbers=(((2,), (0,)), ((), ())),
        preferred_element_type=jnp.float32)                   # (H, W, C_PAD)

    act = jnp.maximum(acc + bc_ref[...], 0.0)                 # bias + ReLU

    # Global-average-pool spatial sum as a sublane reduction (XLU); the
    # 1/(H*W) scale is folded into wf.  The f32 temp here is ~128 KiB of VMEM.
    pooled = jnp.sum(act.reshape(h * w, c_pad), axis=0, keepdims=True)

    # FC head (tiny, once per image), f32.
    o_ref[0] = (jnp.dot(pooled, wf_ref[...],
                        preferred_element_type=jnp.float32) + bf_ref[...])


def composer_classifier_forward(batch, params):
    """Mirrors ComposerClassifier.forward: unpack (inputs, _) -> module(inputs)."""
    inputs, _ = batch                       # NCHW float32
    w_conv, b_conv, w_fc, b_fc = params

    n, c_in, h, w = inputs.shape
    kh = kw = 3
    c_out = w_conv.shape[1]
    num_classes = w_fc.shape[1]

    lane = 128
    c_pad = ((c_out + lane - 1) // lane) * lane
    ncls_pad = ((num_classes + lane - 1) // lane) * lane

    # --- wrapper glue: NCHW -> NHWC + spatial zero pad (1x input traffic) ---
    x = jnp.transpose(inputs, (0, 2, 3, 1)).astype(jnp.float32)
    xp = jnp.pad(x, ((0, 0), (1, 1), (1, 1), (0, 0)))            # (N, H+2, W+2, C_in)
    hp, wp = h + 2, w + 2

    # --- one-time weight packing: lane-pad C_out / num_classes to 128 ---
    wc = jnp.pad(w_conv.astype(jnp.float32),
                 ((0, 0), (0, c_pad - c_out))).astype(jnp.bfloat16)  # (9*C_in, C_PAD)
    bc = jnp.pad(b_conv.reshape(1, c_out).astype(jnp.float32),
                 ((0, 0), (0, c_pad - c_out)))                       # (1, C_PAD)
    # Fold the 1/(H*W) average-pool scale into the FC weight (exact in f32).
    wf = jnp.pad(w_fc.astype(jnp.float32) / float(h * w),
                 ((0, c_pad - c_out), (0, ncls_pad - num_classes)))  # (C_PAD, NCLS_PAD)
    bf = jnp.pad(b_fc.reshape(1, num_classes).astype(jnp.float32),
                 ((0, 0), (0, ncls_pad - num_classes)))              # (1, NCLS_PAD)

    kernel = functools.partial(_classifier_kernel, h=h, w=w, c_in=c_in,
                               kh=kh, kw=kw)

    out = pl.pallas_call(
        kernel,
        out_shape=jax.ShapeDtypeStruct((n, 1, ncls_pad), jnp.float32),
        grid_spec=pltpu.PrefetchScalarGridSpec(
            num_scalar_prefetch=0,
            grid=(n,),                                   # one grid step per image
            in_specs=[
                # whole padded image for this batch element
                pl.BlockSpec((1, hp, wp, c_in), lambda b: (b, 0, 0, 0)),
                pl.BlockSpec((kh * kw * c_in, c_pad), lambda b: (0, 0)),
                pl.BlockSpec((1, c_pad), lambda b: (0, 0)),
                pl.BlockSpec((c_pad, ncls_pad), lambda b: (0, 0)),
                pl.BlockSpec((1, ncls_pad), lambda b: (0, 0)),
            ],
            out_specs=pl.BlockSpec((1, 1, ncls_pad), lambda b: (b, 0, 0)),
            scratch_shapes=[
                pltpu.VMEM((h, w, kh * kw * c_in), jnp.float32),   # patch matrix
            ],
        ),
        compiler_params=pltpu.CompilerParams(
            dimension_semantics=("parallel",),   # v7x shards batch across its 2 TCs
            vmem_limit_bytes=32 * 1024 * 1024,   # explicit cap, safe on v7x's 64 MiB/TC
        ),
    )(xp, wc, bc, wf, bf)

    return out.reshape(n, ncls_pad)[:, :num_classes]


def _reference_forward(batch, params):
    """Pure-JAX reference (high-precision dots) for correctness checking."""
    inputs, _ = batch
    w_conv, b_conv, w_fc, b_fc = params
    n, c, h, w = inputs.shape
    kh = kw = 3
    x = jnp.transpose(inputs, (0, 2, 3, 1))
    xp = jnp.pad(x, ((0, 0), (1, 1), (1, 1), (0, 0)))
    rows = []
    for ki in range(kh):
        for kj in range(kw):
            rows.append(xp[:, ki:ki + h, kj:kj + w, :])
    patches = jnp.stack(rows, axis=3).reshape(n, h * w, kh * kw * c)
    hid = jnp.einsum("nsk,ko->nso", patches, w_conv,
                     precision=jax.lax.Precision.HIGHEST) + b_conv[None]
    hid = jnp.maximum(hid, 0.0)
    pooled = jnp.mean(hid, axis=1)
    return jnp.dot(pooled, w_fc, precision=jax.lax.Precision.HIGHEST) + b_fc


if __name__ == "__main__":
    # Small shapes consistent with an NCHW image classifier.
    N, C_IN, H, W = 2, 4, 16, 16
    C_OUT, NUM_CLASSES = 8, 10
    KH = KW = 3

    key = jax.random.PRNGKey(0)
    k_x, k_wc, k_bc, k_wf, k_bf, k_t = jax.random.split(key, 6)

    inputs = jax.random.normal(k_x, (N, C_IN, H, W), dtype=jnp.float32)
    targets = jax.random.randint(k_t, (N,), 0, NUM_CLASSES)  # unused by forward
    batch = (inputs, targets)

    # Deterministic parameter init (conv weight stored as [KH*KW*C_in, C_out]
    # matching the (ki, kj, c) patch ordering of the reference).
    w_conv = 0.1 * jax.random.normal(k_wc, (KH * KW * C_IN, C_OUT), jnp.float32)
    b_conv = 0.1 * jax.random.normal(k_bc, (1, C_OUT), jnp.float32)
    w_fc = 0.1 * jax.random.normal(k_wf, (C_OUT, NUM_CLASSES), jnp.float32)
    b_fc = 0.1 * jax.random.normal(k_bf, (1, NUM_CLASSES), jnp.float32)
    params = (w_conv, b_conv, w_fc, b_fc)

    out = composer_classifier_forward(batch, params)
    out = jax.block_until_ready(out)

    ref = _reference_forward(batch, params)
    np.testing.assert_allclose(np.asarray(out), np.asarray(ref),
                               rtol=1e-2, atol=1e-3)

    # TODO(synk): loss()/metrics()/validate() (soft_cross_entropy, Accuracy)
    # are training-loop utilities, not part of forward; not implemented here.
    print("KERNEL_OK")
</pallas_src>

<mosaic_0001>
module attributes {stable_mosaic.version = 11 : i64} {
  func.func @_classifier_kernel(%arg0: i32, %arg1: memref<1x18x18x4xf32, #tpu.memory_space<vmem>>, %arg2: memref<36x128xbf16, #tpu.memory_space<vmem>>, %arg3: memref<1x128xf32, #tpu.memory_space<vmem>>, %arg4: memref<128x128xf32, #tpu.memory_space<vmem>>, %arg5: memref<1x128xf32, #tpu.memory_space<vmem>>, %arg6: memref<1x1x128xf32, #tpu.memory_space<vmem>>, %arg7: memref<16x16x36xf32, #tpu.memory_space<vmem>>) attributes {dimension_semantics = [#tpu.dimension_semantics<parallel>], iteration_bounds = array<i64: 2>, scalar_prefetch = 0 : i64, scratch_operands = 1 : i64, tpu.core_type = #tpu.core_type<tc>, window_params = [{transform_indices = @transform_0, window_bounds = array<i64: 1, 18, 18, 4>}, {pipeline_mode = #tpu.pipeline_mode<synchronous>, transform_indices = @transform_1, window_bounds = array<i64: 36, 128>}, {pipeline_mode = #tpu.pipeline_mode<synchronous>, transform_indices = @transform_2, window_bounds = array<i64: 1, 128>}, {pipeline_mode = #tpu.pipeline_mode<synchronous>, transform_indices = @transform_3, window_bounds = array<i64: 128, 128>}, {pipeline_mode = #tpu.pipeline_mode<synchronous>, transform_indices = @transform_4, window_bounds = array<i64: 1, 128>}, {transform_indices = @transform_5, window_bounds = array<i64: 1, 1, 128>}]} {
    %c0 = arith.constant 0 : index
    %c0_0 = arith.constant 0 : index
    %c0_1 = arith.constant 0 : index
    %c0_2 = arith.constant 0 : index
    %0 = vector.load %arg1[%c0, %c0_0, %c0_1, %c0_2] : memref<1x18x18x4xf32, #tpu.memory_space<vmem>>, vector<1x16x16x4xf32>
    %1 = vector.shape_cast %0 : vector<1x16x16x4xf32> to vector<16x16x4xf32>
    %c0_3 = arith.constant 0 : index
    %c0_4 = arith.constant 0 : index
    %c0_5 = arith.constant 0 : index
    %2 = vector.load %arg7[%c0_3, %c0_4, %c0_5] : memref<16x16x36xf32, #tpu.memory_space<vmem>>, vector<16x16x4xf32>
    tpu.vector_store %arg7[%c0_3, %c0_4, %c0_5], %1 {strides = array<i32>} : memref<16x16x36xf32, #tpu.memory_space<vmem>>, vector<16x16x4xf32>,
    %c0_6 = arith.constant 0 : index
    %c0_7 = arith.constant 0 : index
    %c1 = arith.constant 1 : index
    %c0_8 = arith.constant 0 : index
    %3 = vector.load %arg1[%c0_6, %c0_7, %c1, %c0_8] : memref<1x18x18x4xf32, #tpu.memory_space<vmem>>, vector<1x16x16x4xf32>
    %4 = vector.shape_cast %3 : vector<1x16x16x4xf32> to vector<16x16x4xf32>
    %c0_9 = arith.constant 0 : index
    %c0_10 = arith.constant 0 : index
    %c4 = arith.constant 4 : index
    %5 = vector.load %arg7[%c0_9, %c0_10, %c4] : memref<16x16x36xf32, #tpu.memory_space<vmem>>, vector<16x16x4xf32>
    tpu.vector_store %arg7[%c0_9, %c0_10, %c4], %4 {strides = array<i32>} : memref<16x16x36xf32, #tpu.memory_space<vmem>>, vector<16x16x4xf32>,
    %c0_11 = arith.constant 0 : index
    %c0_12 = arith.constant 0 : index
    %c2 = arith.constant 2 : index
    %c0_13 = arith.constant 0 : index
    %6 = vector.load %arg1[%c0_11, %c0_12, %c2, %c0_13] : memref<1x18x18x4xf32, #tpu.memory_space<vmem>>, vector<1x16x16x4xf32>
    %7 = vector.shape_cast %6 : vector<1x16x16x4xf32> to vector<16x16x4xf32>
    %c0_14 = arith.constant 0 : index
    %c0_15 = arith.constant 0 : index
    %c8 = arith.constant 8 : index
    %8 = vector.load %arg7[%c0_14, %c0_15, %c8] : memref<16x16x36xf32, #tpu.memory_space<vmem>>, vector<16x16x4xf32>
    tpu.vector_store %arg7[%c0_14, %c0_15, %c8], %7 {strides = array<i32>} : memref<16x16x36xf32, #tpu.memory_space<vmem>>, vector<16x16x4xf32>,
    %c0_16 = arith.constant 0 : index
    %c1_17 = arith.constant 1 : index
    %c0_18 = arith.constant 0 : index
    %c0_19 = arith.constant 0 : index
    %9 = vector.load %arg1[%c0_16, %c1_17, %c0_18, %c0_19] : memref<1x18x18x4xf32, #tpu.memory_space<vmem>>, vector<1x16x16x4xf32>
    %10 = vector.shape_cast %9 : vector<1x16x16x4xf32> to vector<16x16x4xf32>
    %c0_20 = arith.constant 0 : index
    %c0_21 = arith.constant 0 : index
    %c12 = arith.constant 12 : index
    %11 = vector.load %arg7[%c0_20, %c0_21, %c12] : memref<16x16x36xf32, #tpu.memory_space<vmem>>, vector<16x16x4xf32>
    tpu.vector_store %arg7[%c0_20, %c0_21, %c12], %10 {strides = array<i32>} : memref<16x16x36xf32, #tpu.memory_space<vmem>>, vector<16x16x4xf32>,
    %c0_22 = arith.constant 0 : index
    %c1_23 = arith.constant 1 : index
    %c1_24 = arith.constant 1 : index
    %c0_25 = arith.constant 0 : index
    %12 = vector.load %arg1[%c0_22, %c1_23, %c1_24, %c0_25] : memref<1x18x18x4xf32, #tpu.memory_space<vmem>>, vector<1x16x16x4xf32>
    %13 = vector.shape_cast %12 : vector<1x16x16x4xf32> to vector<16x16x4xf32>
    %c0_26 = arith.constant 0 : index
    %c0_27 = arith.constant 0 : index
    %c16 = arith.constant 16 : index
    %14 = vector.load %arg7[%c0_26, %c0_27, %c16] : memref<16x16x36xf32, #tpu.memory_space<vmem>>, vector<16x16x4xf32>
    tpu.vector_store %arg7[%c0_26, %c0_27, %c16], %13 {strides = array<i32>} : memref<16x16x36xf32, #tpu.memory_space<vmem>>, vector<16x16x4xf32>,
    %c0_28 = arith.constant 0 : index
    %c1_29 = arith.constant 1 : index
    %c2_30 = arith.constant 2 : index
    %c0_31 = arith.constant 0 : index
    %15 = vector.load %arg1[%c0_28, %c1_29, %c2_30, %c0_31] : memref<1x18x18x4xf32, #tpu.memory_space<vmem>>, vector<1x16x16x4xf32>
    %16 = vector.shape_cast %15 : vector<1x16x16x4xf32> to vector<16x16x4xf32>
    %c0_32 = arith.constant 0 : index
    %c0_33 = arith.constant 0 : index
    %c20 = arith.constant 20 : index
    %17 = vector.load %arg7[%c0_32, %c0_33, %c20] : memref<16x16x36xf32, #tpu.memory_space<vmem>>, vector<16x16x4xf32>
    tpu.vector_store %arg7[%c0_32, %c0_33, %c20], %16 {strides = array<i32>} : memref<16x16x36xf32, #tpu.memory_space<vmem>>, vector<16x16x4xf32>,
    %c0_34 = arith.constant 0 : index
    %c2_35 = arith.constant 2 : index
    %c0_36 = arith.constant 0 : index
    %c0_37 = arith.constant 0 : index
    %18 = vector.load %arg1[%c0_34, %c2_35, %c0_36, %c0_37] : memref<1x18x18x4xf32, #tpu.memory_space<vmem>>, vector<1x16x16x4xf32>
    %19 = vector.shape_cast %18 : vector<1x16x16x4xf32> to vector<16x16x4xf32>
    %c0_38 = arith.constant 0 : index
    %c0_39 = arith.constant 0 : index
    %c24 = arith.constant 24 : index
    %20 = vector.load %arg7[%c0_38, %c0_39, %c24] : memref<16x16x36xf32, #tpu.memory_space<vmem>>, vector<16x16x4xf32>
    tpu.vector_store %arg7[%c0_38, %c0_39, %c24], %19 {strides = array<i32>} : memref<16x16x36xf32, #tpu.memory_space<vmem>>, vector<16x16x4xf32>,
    %c0_40 = arith.constant 0 : index
    %c2_41 = arith.constant 2 : index
    %c1_42 = arith.constant 1 : index
    %c0_43 = arith.constant 0 : index
    %21 = vector.load %arg1[%c0_40, %c2_41, %c1_42, %c0_43] : memref<1x18x18x4xf32, #tpu.memory_space<vmem>>, vector<1x16x16x4xf32>
    %22 = vector.shape_cast %21 : vector<1x16x16x4xf32> to vector<16x16x4xf32>
    %c0_44 = arith.constant 0 : index
    %c0_45 = arith.constant 0 : index
    %c28 = arith.constant 28 : index
    %23 = vector.load %arg7[%c0_44, %c0_45, %c28] : memref<16x16x36xf32, #tpu.memory_space<vmem>>, vector<16x16x4xf32>
    tpu.vector_store %arg7[%c0_44, %c0_45, %c28], %22 {strides = array<i32>} : memref<16x16x36xf32, #tpu.memory_space<vmem>>, vector<16x16x4xf32>,
    %c0_46 = arith.constant 0 : index
    %c2_47 = arith.constant 2 : index
    %c2_48 = arith.constant 2 : index
    %c0_49 = arith.constant 0 : index
    %24 = vector.load %arg1[%c0_46, %c2_47, %c2_48, %c0_49] : memref<1x18x18x4xf32, #tpu.memory_space<vmem>>, vector<1x16x16x4xf32>
    %25 = vector.shape_cast %24 : vector<1x16x16x4xf32> to vector<16x16x4xf32>
    %c0_50 = arith.constant 0 : index
    %c0_51 = arith.constant 0 : index
    %c32 = arith.constant 32 : index
    %26 = vector.load %arg7[%c0_50, %c0_51, %c32] : memref<16x16x36xf32, #tpu.memory_space<vmem>>, vector<16x16x4xf32>
    tpu.vector_store %arg7[%c0_50, %c0_51, %c32], %25 {strides = array<i32>} : memref<16x16x36xf32, #tpu.memory_space<vmem>>, vector<16x16x4xf32>,
    %c0_52 = arith.constant 0 : index
    %c0_53 = arith.constant 0 : index
    %c0_54 = arith.constant 0 : index
    %27 = vector.load %arg7[%c0_52, %c0_53, %c0_54] : memref<16x16x36xf32, #tpu.memory_space<vmem>>, vector<16x16x36xf32>
    %28 = arith.truncf %27 : vector<16x16x36xf32> to vector<16x16x36xbf16>
    %c0_55 = arith.constant 0 : index
    %c0_56 = arith.constant 0 : index
    %29 = vector.load %arg2[%c0_55, %c0_56] : memref<36x128xbf16, #tpu.memory_space<vmem>>, vector<36x128xbf16>
    %cst = arith.constant dense<0.000000e+00> : vector<16x16x128xf32>
    %30 = tpu.matmul %28, %29, %cst {dimension_numbers = #tpu.dot_dimension_numbers<[2], [0], [0, 1], [1], [0, 0, 0, 1, 1, 1], [], []>} : vector<16x16x36xbf16>, vector<36x128xbf16>, vector<16x16x128xf32> -> vector<16x16x128xf32>
    %c0_57 = arith.constant 0 : index
    %c0_58 = arith.constant 0 : index
    %31 = vector.load %arg3[%c0_57, %c0_58] : memref<1x128xf32, #tpu.memory_space<vmem>>, vector<1x128xf32>
    %32 = vector.shape_cast %31 : vector<1x128xf32> to vector<1x1x128xf32>
    %33 = vector.broadcast %32 : vector<1x1x128xf32> to vector<16x16x128xf32>
    %34 = arith.addf %30, %33 : vector<16x16x128xf32>
    %cst_59 = arith.constant 0.000000e+00 : f32
    %35 = vector.broadcast %cst_59 : f32 to vector<16x16x128xf32>
    %36 = arith.maximumf %34, %35 : vector<16x16x128xf32>
    %37 = vector.shape_cast %36 : vector<16x16x128xf32> to vector<256x128xf32>
    %cst_60 = arith.constant dense<0.000000e+00> : vector<128xf32>
    %38 = vector.multi_reduction <add>, %37, %cst_60 [0] : vector<256x128xf32> to vector<128xf32>
    %39 = vector.shape_cast %38 : vector<128xf32> to vector<1x128xf32>
    %c0_61 = arith.constant 0 : index
    %c0_62 = arith.constant 0 : index
    %40 = vector.load %arg4[%c0_61, %c0_62] : memref<128x128xf32, #tpu.memory_space<vmem>>, vector<128x128xf32>
    %cst_63 = arith.constant dense<0.000000e+00> : vector<1x128xf32>
    %41 = tpu.matmul %39, %40, %cst_63 {dimension_numbers = #tpu.dot_dimension_numbers<[1], [0], [0], [1], [0, 0, 1, 1], [], []>} : vector<1x128xf32>, vector<128x128xf32>, vector<1x128xf32> -> vector<1x128xf32>
    %c0_64 = arith.constant 0 : index
    %c0_65 = arith.constant 0 : index
    %42 = vector.load %arg5[%c0_64, %c0_65] : memref<1x128xf32, #tpu.memory_space<vmem>>, vector<1x128xf32>
    %43 = arith.addf %41, %42 : vector<1x128xf32>
    %c0_66 = arith.constant 0 : index
    %c0_67 = arith.constant 0 : index
    %c0_68 = arith.constant 0 : index
    %44 = vector.load %arg6[%c0_66, %c0_67, %c0_68] : memref<1x1x128xf32, #tpu.memory_space<vmem>>, vector<1x1x128xf32>
    %45 = vector.shape_cast %44 : vector<1x1x128xf32> to vector<1x128xf32>
    %46 = vector.shape_cast %43 : vector<1x128xf32> to vector<1x1x128xf32>
    tpu.vector_store %arg6[%c0_66, %c0_67, %c0_68], %46 {strides = array<i32>} : memref<1x1x128xf32, #tpu.memory_space<vmem>>, vector<1x1x128xf32>,
    return
  }
  func.func @transform_0(%arg0: i32) -> (i32, i32, i32, i32) {
    %c0_i32 = arith.constant 0 : i32
    %c0_i32_0 = arith.constant 0 : i32
    %c0_i32_1 = arith.constant 0 : i32
    %c0_i32_2 = arith.constant 0 : i32
    return %arg0, %c0_i32, %c0_i32_0, %c0_i32_1 : i32, i32, i32, i32
  }
  func.func @transform_1(%arg0: i32) -> (i32, i32) {
    %c0_i32 = arith.constant 0 : i32
    %c0_i32_0 = arith.constant 0 : i32
    %c0_i32_1 = arith.constant 0 : i32
    return %c0_i32, %c0_i32_0 : i32, i32
  }
  func.func @transform_2(%arg0: i32) -> (i32, i32) {
    %c0_i32 = arith.constant 0 : i32
    %c0_i32_0 = arith.constant 0 : i32
    %c0_i32_1 = arith.constant 0 : i32
    return %c0_i32, %c0_i32_0 : i32, i32
  }
  func.func @transform_3(%arg0: i32) -> (i32, i32) {
    %c0_i32 = arith.constant 0 : i32
    %c0_i32_0 = arith.constant 0 : i32
    %c0_i32_1 = arith.constant 0 : i32
    return %c0_i32, %c0_i32_0 : i32, i32
  }
  func.func @transform_4(%arg0: i32) -> (i32, i32) {
    %c0_i32 = arith.constant 0 : i32
    %c0_i32_0 = arith.constant 0 : i32
    %c0_i32_1 = arith.constant 0 : i32
    return %c0_i32, %c0_i32_0 : i32, i32
  }
  func.func @transform_5(%arg0: i32) -> (i32, i32, i32) {
    %c0_i32 = arith.constant 0 : i32
    %c0_i32_0 = arith.constant 0 : i32
    %c0_i32_1 = arith.constant 0 : i32
    return %arg0, %c0_i32, %c0_i32_0 : i32, i32, i32
  }
}

</mosaic_0001>

<llo_original>
// kernel: tpu_custom_call.1
$region0: #{tpu_custom_call.1}
  #allocation0 [shape = 'u32[]', space=smem, size = 0x4, offset = 0x4, fixed_abs, tag = 'smem constant byte address 0x4 - core index']
  #allocation1 [shape = 'u32[144,128]{1,0:T(1,128)}', space=vmem, size = 0x12000, scoped, tag = 'internal scratch']
  #allocation2 [shape = 'f32[16,16,36]{2,1,0:T(8,128)}', space=vmem, size = 0x20000, scoped, tag = 'scratch operand']
  %s0 = inlined_call_operand.vmem [shape: f32[2,18,18,4], index: 0, kind: input, shape index: {}]
  %s1 = inlined_call_operand.vmem [shape: bf16[36,128], index: 1, kind: input, shape index: {}]
  %s2 = inlined_call_operand.vmem [shape: f32[1,128], index: 2, kind: input, shape index: {}]
  %s3 = inlined_call_operand.vmem [shape: f32[128,128], index: 3, kind: input, shape index: {}]
  %s4 = inlined_call_operand.vmem [shape: f32[1,128], index: 4, kind: input, shape index: {}]
  %s5 = inlined_call_operand.hbm [shape: f32[2,1,128], index: 5, kind: output, shape index: {}]
  %s6 = sld [smem:[#allocation0]]
  $region53: #{tpu_custom_call.1} parent=0
    _
  %s8 = ssub.s32 1, %s6
  %s9 = scalar_select 0, %s8, %s6
  $region1: #{tpu_custom_call.1} parent=0
    #allocation3 [shape = 'u8[1024]{0}', space=vmem, size = 0x400, scoped, tag = 'output window, operand 0']
    #allocation4 [shape = 's32[2]{0}', space=sflag, size = 0x8, scoped, tag = 'scoped memory for tpu_custom_call.1']
    %10 = vsyncpa [#allocation4], 0
    %s11 = scalar_lea.sflag [#allocation4], 1
    %12 = vsyncpa %s11, 0
    loop: start=0, step=1, limit=4
    $region2: #{tpu_custom_call.1} parent=1 // loop_pre_header
      _
    $region3: #{tpu_custom_call.1} parent=1 // loop_header
      %s14 = sphi 0, %s18
      %p15 = scmp.ge.s32.totalorder %s14, 4
      %s24 = sphi 0, %s26
      %s27 = sphi 0, %s24
      %s28 = sphi 0, %s27
      %s44 = sphi 0, %s28
      %s48 = sphi 0, %s48
      %s50 = sphi 0, %s48
      %s51 = sphi 0, %s50
      %s65 = sphi 0, %s51
      %s69 = sphi 0, %s69
      %s71 = sphi 0, %s69
      %s72 = sphi 0, %s71
      %s86 = sphi 0, %s72
      %s90 = sphi 0, %s90
      %s92 = sphi 0, %s90
      %s93 = sphi 0, %s92
      %s107 = sphi 0, %s93
      %s111 = sphi 0, %s111
      %s113 = sphi 0, %s111
      %s114 = sphi 0, %s113
      %s128 = sphi 0, %s114
      %s134 = sphi 0, %s136
      %s137 = sphi 0, %s134
      %s138 = sphi 0, %s137
      %s154 = sphi 0, %s138
    $region4: #{tpu_custom_call.1} parent=1 // loop_header_branch
      %17 = sbr.rel (%p15) target = $region8
    $region5: #{tpu_custom_call.1} parent=1 // loop_body
      %s19 = ssub.s32 %s14, 1
      %s20 = ssub.s32 %s14, 2
      %s21 = sadd.s32 %s14, 1
      %s22 = ssub.s32 %s14, %s21
      %p23 = scmp.eq.s32.totalorder %s22, 0
      %s25 = sadd.s32 %s24, 1
      %s26 = scalar_select %p23, %s24, %s25
      %p29 = pneg %p23
      %p30 = scmp.eq.s32.totalorder %s14, 1
      %p31 = por %p29, %p30
      %p32 = scmp.ne.s32.totalorder %s24, %s27
      %p33 = scmp.eq.s32.totalorder %s14, 0
      %p34 = por %p32, %p33
      %p35 = scmp.ne.s32.totalorder %s24, %s27
      %p36 = scmp.eq.s32.totalorder %s19, 1
      %p37 = por %p35, %p36
      %p38 = scmp.ne.s32.totalorder %s27, %s28
      %p39 = scmp.eq.s32.totalorder %s19, 0
      %p40 = por %p38, %p39
      %p41 = scmp.ne.s32.totalorder %s27, %s28
      %p42 = scmp.eq.s32.totalorder %s20, 1
      %p43 = por %p41, %p42
      %p45 = scmp.ne.s32.totalorder %s28, %s44
      %p46 = scmp.eq.s32.totalorder %s20, 0
      %p47 = por %p45, %p46
      %s49 = sadd.s32 %s48, 1
      %p52 = scmp.eq.s32.totalorder %s14, 1
      %p53 = scmp.ne.s32.totalorder %s48, %s50
      %p54 = scmp.eq.s32.totalorder %s14, 0
      %p55 = por %p53, %p54
      %p56 = scmp.ne.s32.totalorder %s48, %s50
      %p57 = scmp.eq.s32.totalorder %s19, 1
      %p58 = por %p56, %p57
      %p59 = scmp.ne.s32.totalorder %s50, %s51
      %p60 = scmp.eq.s32.totalorder %s19, 0
      %p61 = por %p59, %p60
      %p62 = scmp.ne.s32.totalorder %s50, %s51
      %p63 = scmp.eq.s32.totalorder %s20, 1
      %p64 = por %p62, %p63
      %p66 = scmp.ne.s32.totalorder %s51, %s65
      %p67 = scmp.eq.s32.totalorder %s20, 0
      %p68 = por %p66, %p67
      %s70 = sadd.s32 %s69, 1
      %p73 = scmp.eq.s32.totalorder %s14, 1
      %p74 = scmp.ne.s32.totalorder %s69, %s71
      %p75 = scmp.eq.s32.totalorder %s14, 0
      %p76 = por %p74, %p75
      %p77 = scmp.ne.s32.totalorder %s69, %s71
      %p78 = scmp.eq.s32.totalorder %s19, 1
      %p79 = por %p77, %p78
      %p80 = scmp.ne.s32.totalorder %s71, %s72
      %p81 = scmp.eq.s32.totalorder %s19, 0
      %p82 = por %p80, %p81
      %p83 = scmp.ne.s32.totalorder %s71, %s72
      %p84 = scmp.eq.s32.totalorder %s20, 1
      %p85 = por %p83, %p84
      %p87 = scmp.ne.s32.totalorder %s72, %s86
      %p88 = scmp.eq.s32.totalorder %s20, 0
      %p89 = por %p87, %p88
      %s91 = sadd.s32 %s90, 1
      %p94 = scmp.eq.s32.totalorder %s14, 1
      %p95 = scmp.ne.s32.totalorder %s90, %s92
      %p96 = scmp.eq.s32.totalorder %s14, 0
      %p97 = por %p95, %p96
      %p98 = scmp.ne.s32.totalorder %s90, %s92
      %p99 = scmp.eq.s32.totalorder %s19, 1
      %p100 = por %p98, %p99
      %p101 = scmp.ne.s32.totalorder %s92, %s93
      %p102 = scmp.eq.s32.totalorder %s19, 0
      %p103 = por %p101, %p102
      %p104 = scmp.ne.s32.totalorder %s92, %s93
      %p105 = scmp.eq.s32.totalorder %s20, 1
      %p106 = por %p104, %p105
      %p108 = scmp.ne.s32.totalorder %s93, %s107
      %p109 = scmp.eq.s32.totalorder %s20, 0
      %p110 = por %p108, %p109
      %s112 = sadd.s32 %s111, 1
      %p115 = scmp.eq.s32.totalorder %s14, 1
      %p116 = scmp.ne.s32.totalorder %s111, %s113
      %p117 = scmp.eq.s32.totalorder %s14, 0
      %p118 = por %p116, %p117
      %p119 = scmp.ne.s32.totalorder %s111, %s113
      %p120 = scmp.eq.s32.totalorder %s19, 1
      %p121 = por %p119, %p120
      %p122 = scmp.ne.s32.totalorder %s113, %s114
      %p123 = scmp.eq.s32.totalorder %s19, 0
      %p124 = por %p122, %p123
      %p125 = scmp.ne.s32.totalorder %s113, %s114
      %p126 = scmp.eq.s32.totalorder %s20, 1
      %p127 = por %p125, %p126
      %p129 = scmp.ne.s32.totalorder %s114, %s128
      %p130 = scmp.eq.s32.totalorder %s20, 0
      %p131 = por %p129, %p130
      %s132 = ssub.s32 %s14, %s21
      %p133 = scmp.eq.s32.totalorder %s132, 0
      %s135 = sadd.s32 %s134, 1
      %s136 = scalar_select %p133, %s134, %s135
      %p139 = pneg %p133
      %p140 = scmp.eq.s32.totalorder %s14, 1
      %p141 = por %p139, %p140
      %p142 = scmp.ne.s32.totalorder %s134, %s137
      %p143 = scmp.eq.s32.totalorder %s14, 0
      %p144 = por %p142, %p143
      %p145 = scmp.ne.s32.totalorder %s134, %s137
      %p146 = scmp.eq.s32.totalorder %s19, 1
      %p147 = por %p145, %p146
      %p148 = scmp.ne.s32.totalorder %s137, %s138
      %p149 = scmp.eq.s32.totalorder %s19, 0
      %p150 = por %p148, %p149
      %p151 = scmp.ne.s32.totalorder %s137, %s138
      %p152 = scmp.eq.s32.totalorder %s20, 1
      %p153 = por %p151, %p152
      %p155 = scmp.ne.s32.totalorder %s138, %s154
      %p156 = scmp.eq.s32.totalorder %s20, 0
      %p157 = por %p155, %p156
      %p158 = scmp.le.s32.totalorder 1, %s14
      %p159 = scmp.lt.s32.totalorder %s14, 3
      %p160 = pnand %p158, %p159
      %p161 = pneg %p160
      // Predicated region
      $region9: #{tpu_custom_call.1} parent=5 // pred_check
        _
      $region10: #{tpu_custom_call.1} parent=5 // pred_check_branch
        %163 = sbr.rel (%p160) target = $region12
      $region11: #{tpu_custom_call.1} parent=5 // pred_region
        %s164 = ssub.s32 %s14, 1
        // Predicated region
        $region13: #{tpu_custom_call.1} parent=11 // pred_check
          %p165 = pneg %p61
        $region14: #{tpu_custom_call.1} parent=11 // pred_check_branch
          %167 = sbr.rel (%p165) target = $region16
        $region15: #{tpu_custom_call.1} parent=11 // pred_region
          _
        $region16: #{tpu_custom_call.1} parent=11 // pred_fallthru
          _
        // Predicated region
        $region17: #{tpu_custom_call.1} parent=11 // pred_check
          %p168 = pneg %p82
        $region18: #{tpu_custom_call.1} parent=11 // pred_check_branch
          %170 = sbr.rel (%p168) target = $region20
        $region19: #{tpu_custom_call.1} parent=11 // pred_region
          _
        $region20: #{tpu_custom_call.1} parent=11 // pred_fallthru
          _
        // Predicated region
        $region21: #{tpu_custom_call.1} parent=11 // pred_check
          %p171 = pneg %p103
        $region22: #{tpu_custom_call.1} parent=11 // pred_check_branch
          %173 = sbr.rel (%p171) target = $region24
        $region23: #{tpu_custom_call.1} parent=11 // pred_region
          _
        $region24: #{tpu_custom_call.1} parent=11 // pred_fallthru
          _
        // Predicated region
        $region25: #{tpu_custom_call.1} parent=11 // pred_check
          %p174 = pneg %p124
        $region26: #{tpu_custom_call.1} parent=11 // pred_check_branch
          %176 = sbr.rel (%p174) target = $region28
        $region27: #{tpu_custom_call.1} parent=11 // pred_region
          _
        $region28: #{tpu_custom_call.1} parent=11 // pred_fallthru
          _
      $region12: #{tpu_custom_call.1} parent=5 // pred_fallthru
        _
      %p177 = scmp.lt.s32.totalorder %s14, 2
      // Predicated region
      $region29: #{tpu_custom_call.1} parent=5 // pred_check
        %p178 = pneg %p177
      $region30: #{tpu_custom_call.1} parent=5 // pred_check_branch
        %180 = sbr.rel (%p178) target = $region32
      $region31: #{tpu_custom_call.1} parent=5 // pred_region
        // Predicated region
        $region33: #{tpu_custom_call.1} parent=31 // pred_check
          %p181 = pneg %p34
        $region34: #{tpu_custom_call.1} parent=31 // pred_check_branch
          %183 = sbr.rel (%p181) target = $region36
        $region35: #{tpu_custom_call.1} parent=31 // pred_region
          %p184 = scmp.lt.s32.totalorder %s14, 1
          %s185 = scalar_select %p184, %s14, 1
          %s186 = smul.addr %s185, 54
          %s187 = smul.addr %s186, 8
          %s188 = scalar_lea.vmem %s0, %s187
        $region36: #{tpu_custom_call.1} parent=31 // pred_fallthru
          _
      $region32: #{tpu_custom_call.1} parent=5 // pred_fallthru
        _
      %p189 = scmp.le.s32.totalorder 1, %s14
      %p190 = scmp.lt.s32.totalorder %s14, 3
      %p191 = pnand %p189, %p190
      %p192 = pneg %p191
      // Predicated region
      $region37: #{tpu_custom_call.1} parent=5 // pred_check
        _
      $region38: #{tpu_custom_call.1} parent=5 // pred_check_branch
        %194 = sbr.rel (%p191) target = $region40
      $region39: #{tpu_custom_call.1} parent=5 // pred_region
        %s195 = ssub.s32 %s14, 1
        %p196 = scmp.lt.s32.totalorder %s19, 1
        %s197 = scalar_select %p196, %s19, 1
        %s198 = smul.addr %s197, 54
        %s199 = smul.addr %s198, 8
        %s200 = scalar_lea.vmem %s0, %s199
        %p201 = pneg %p40
        %p202 = pneg %p37
        %p203 = pneg %p61
        %p204 = pneg %p58
        %p205 = pneg %p82
        %p206 = pneg %p79
        %p207 = pneg %p103
        %p208 = pneg %p100
        %p209 = pneg %p124
        %p210 = pneg %p121
        %p211 = pneg %p150
        %p212 = pneg %p147
        %s213 = sand.u32 %s137, 1
        %s214 = scalar_lea.sflag [#allocation4], %s213
        %s215 = sand.u32 %s137, 1
        %s216 = scalar_lea.vmem [#allocation3], %s215
        %p217 = scmp.lt.s32.totalorder %s19, 1
        %s218 = scalar_select %p217, %s19, 1
        %s219 = smul.addr %s218, 54
        %s220 = smul.addr %s219, 8
        %s221 = scalar_lea.vmem %s0, %s220
        %v223 = vld [vmem:[%s221] sm:$0xff]
        %v224 = vld [vmem:[%s221 + $0x8] sm:$0xff]
        %v225 = vld [vmem:[%s221 + $0x18] sm:$0xff]
        %v226 = vld [vmem:[%s221 + $0x20] sm:$0xff]
        %v227 = vld [vmem:[%s221 + $0x30] sm:$0xff]
        %v228 = vld [vmem:[%s221 + $0x38] sm:$0xff]
        %v229 = vld [vmem:[%s221 + $0x48] sm:$0xff]
        %v230 = vld [vmem:[%s221 + $0x50] sm:$0xff]
        %v231 = vld [vmem:[%s221 + $0x60] sm:$0xff]
        %v232 = vld [vmem:[%s221 + $0x68] sm:$0xff]
        %v233 = vld [vmem:[%s221 + $0x78] sm:$0xff]
        %v234 = vld [vmem:[%s221 + $0x80] sm:$0xff]
        %v235 = vld [vmem:[%s221 + $0x90] sm:$0xff]
        %v236 = vld [vmem:[%s221 + $0x98] sm:$0xff]
        %v237 = vld [vmem:[%s221 + $0xa8] sm:$0xff]
        %v238 = vld [vmem:[%s221 + $0xb0] sm:$0xff]
        %v239 = vld [vmem:[%s221 + $0xc0] sm:$0xff]
        %v240 = vld [vmem:[%s221 + $0xc8] sm:$0xff]
        %v241 = vld [vmem:[%s221 + $0xd8] sm:$0xff]
        %v242 = vld [vmem:[%s221 + $0xe0] sm:$0xff]
        %v243 = vld [vmem:[%s221 + $0xf0] sm:$0xff]
        %v244 = vld [vmem:[%s221 + $0xf8] sm:$0xff]
        %v245 = vld [vmem:[%s221 + $0x108] sm:$0xff]
        %v246 = vld [vmem:[%s221 + $0x110] sm:$0xff]
        %v247 = vld [vmem:[%s221 + $0x120] sm:$0xff]
        %v248 = vld [vmem:[%s221 + $0x128] sm:$0xff]
        %v249 = vld [vmem:[%s221 + $0x138] sm:$0xff]
        %v250 = vld [vmem:[%s221 + $0x140] sm:$0xff]
        %v251 = vld [vmem:[%s221 + $0x150] sm:$0xff]
        %v252 = vld [vmem:[%s221 + $0x158] sm:$0xff]
        %v253 = vld [vmem:[%s221 + $0x168] sm:$0xff]
        %v254 = vld [vmem:[%s221 + $0x170] sm:$0xff]
        %vm255 = vcmask 31744
        %256 = vst.msk [vmem:[#allocation2] sm:$0xff] %vm255, %v223
        %257 = vst.msk [vmem:[#allocation2 + $0x8] sm:$0xff] %vm255, %v224
        %258 = vst.msk [vmem:[#allocation2 + $0x10] sm:$0xff] %vm255, %v225
        %259 = vst.msk [vmem:[#allocation2 + $0x18] sm:$0xff] %vm255, %v226
        %260 = vst.msk [vmem:[#allocation2 + $0x20] sm:$0xff] %vm255, %v227
        %261 = vst.msk [vmem:[#allocation2 + $0x28] sm:$0xff] %vm255, %v228
        %262 = vst.msk [vmem:[#allocation2 + $0x30] sm:$0xff] %vm255, %v229
        %263 = vst.msk [vmem:[#allocation2 + $0x38] sm:$0xff] %vm255, %v230
        %264 = vst.msk [vmem:[#allocation2 + $0x40] sm:$0xff] %vm255, %v231
        %265 = vst.msk [vmem:[#allocation2 + $0x48] sm:$0xff] %vm255, %v232
        %266 = vst.msk [vmem:[#allocation2 + $0x50] sm:$0xff] %vm255, %v233
        %267 = vst.msk [vmem:[#allocation2 + $0x58] sm:$0xff] %vm255, %v234
        %268 = vst.msk [vmem:[#allocation2 + $0x60] sm:$0xff] %vm255, %v235
        %269 = vst.msk [vmem:[#allocation2 + $0x68] sm:$0xff] %vm255, %v236
        %270 = vst.msk [vmem:[#allocation2 + $0x70] sm:$0xff] %vm255, %v237
        %271 = vst.msk [vmem:[#allocation2 + $0x78] sm:$0xff] %vm255, %v238
        %272 = vst.msk [vmem:[#allocation2 + $0x80] sm:$0xff] %vm255, %v239
        %273 = vst.msk [vmem:[#allocation2 + $0x88] sm:$0xff] %vm255, %v240
        %274 = vst.msk [vmem:[#allocation2 + $0x90] sm:$0xff] %vm255, %v241
        %275 = vst.msk [vmem:[#allocation2 + $0x98] sm:$0xff] %vm255, %v242
        %276 = vst.msk [vmem:[#allocation2 + $0xa0] sm:$0xff] %vm255, %v243
        %277 = vst.msk [vmem:[#allocation2 + $0xa8] sm:$0xff] %vm255, %v244
        %278 = vst.msk [vmem:[#allocation2 + $0xb0] sm:$0xff] %vm255, %v245
        %279 = vst.msk [vmem:[#allocation2 + $0xb8] sm:$0xff] %vm255, %v246
        %280 = vst.msk [vmem:[#allocation2 + $0xc0] sm:$0xff] %vm255, %v247
        %281 = vst.msk [vmem:[#allocation2 + $0xc8] sm:$0xff] %vm255, %v248
        %282 = vst.msk [vmem:[#allocation2 + $0xd0] sm:$0xff] %vm255, %v249
        %283 = vst.msk [vmem:[#allocation2 + $0xd8] sm:$0xff] %vm255, %v250
        %284 = vst.msk [vmem:[#allocation2 + $0xe0] sm:$0xff] %vm255, %v251
        %285 = vst.msk [vmem:[#allocation2 + $0xe8] sm:$0xff] %vm255, %v252
        %286 = vst.msk [vmem:[#allocation2 + $0xf0] sm:$0xff] %vm255, %v253
        %287 = vst.msk [vmem:[#allocation2 + $0xf8] sm:$0xff] %vm255, %v254
        %v288 = vld [vmem:[%s221 + $0x1] sm:$0xff]
        %v289 = vld [vmem:[%s221 + $0x9] sm:$0xff]
        %v290 = vld [vmem:[%s221 + $0x19] sm:$0xff]
        %v291 = vld [vmem:[%s221 + $0x21] sm:$0xff]
        %v292 = vld [vmem:[%s221 + $0x31] sm:$0xff]
        %v293 = vld [vmem:[%s221 + $0x39] sm:$0xff]
        %v294 = vld [vmem:[%s221 + $0x49] sm:$0xff]
        %v295 = vld [vmem:[%s221 + $0x51] sm:$0xff]
        %v296 = vld [vmem:[%s221 + $0x61] sm:$0xff]
        %v297 = vld [vmem:[%s221 + $0x69] sm:$0xff]
        %v298 = vld [vmem:[%s221 + $0x79] sm:$0xff]
        %v299 = vld [vmem:[%s221 + $0x81] sm:$0xff]
        %v300 = vld [vmem:[%s221 + $0x91] sm:$0xff]
        %v301 = vld [vmem:[%s221 + $0x99] sm:$0xff]
        %v302 = vld [vmem:[%s221 + $0xa9] sm:$0xff]
        %v303 = vld [vmem:[%s221 + $0xb1] sm:$0xff]
        %v304 = vld [vmem:[%s221 + $0xc1] sm:$0xff]
        %v305 = vld [vmem:[%s221 + $0xc9] sm:$0xff]
        %v306 = vld [vmem:[%s221 + $0xd9] sm:$0xff]
        %v307 = vld [vmem:[%s221 + $0xe1] sm:$0xff]
        %v308 = vld [vmem:[%s221 + $0xf1] sm:$0xff]
        %v309 = vld [vmem:[%s221 + $0xf9] sm:$0xff]
        %v310 = vld [vmem:[%s221 + $0x109] sm:$0xff]
        %v311 = vld [vmem:[%s221 + $0x111] sm:$0xff]
        %v312 = vld [vmem:[%s221 + $0x121] sm:$0xff]
        %v313 = vld [vmem:[%s221 + $0x129] sm:$0xff]
        %v314 = vld [vmem:[%s221 + $0x139] sm:$0xff]
        %v315 = vld [vmem:[%s221 + $0x141] sm:$0xff]
        %v316 = vld [vmem:[%s221 + $0x151] sm:$0xff]
        %v317 = vld [vmem:[%s221 + $0x159] sm:$0xff]
        %v318 = vld [vmem:[%s221 + $0x169] sm:$0xff]
        %v319 = vld [vmem:[%s221 + $0x171] sm:$0xff]
        %352 = vrot.lane.b32.xlu0 %v288, 4
        %v353 = vpop.permute.xlu0 %352
        %354 = vrot.lane.b32.xlu0 %v289, 4
        %v355 = vpop.permute.xlu0 %354
        %356 = vrot.lane.b32.xlu0 %v290, 4
        %v357 = vpop.permute.xlu0 %356
        %358 = vrot.lane.b32.xlu0 %v291, 4
        %v359 = vpop.permute.xlu0 %358
        %360 = vrot.lane.b32.xlu0 %v292, 4
        %v361 = vpop.permute.xlu0 %360
        %362 = vrot.lane.b32.xlu0 %v293, 4
        %v363 = vpop.permute.xlu0 %362
        %364 = vrot.lane.b32.xlu0 %v294, 4
        %v365 = vpop.permute.xlu0 %364
        %366 = vrot.lane.b32.xlu0 %v295, 4
        %v367 = vpop.permute.xlu0 %366
        %368 = vrot.lane.b32.xlu0 %v296, 4
        %v369 = vpop.permute.xlu0 %368
        %370 = vrot.lane.b32.xlu0 %v297, 4
        %v371 = vpop.permute.xlu0 %370
        %372 = vrot.lane.b32.xlu0 %v298, 4
        %v373 = vpop.permute.xlu0 %372
        %374 = vrot.lane.b32.xlu0 %v299, 4
        %v375 = vpop.permute.xlu0 %374
        %376 = vrot.lane.b32.xlu0 %v300, 4
        %v377 = vpop.permute.xlu0 %376
        %378 = vrot.lane.b32.xlu0 %v301, 4
        %v379 = vpop.permute.xlu0 %378
        %380 = vrot.lane.b32.xlu0 %v302, 4
        %v381 = vpop.permute.xlu0 %380
        %382 = vrot.lane.b32.xlu0 %v303, 4
        %v383 = vpop.permute.xlu0 %382
        %384 = vrot.lane.b32.xlu0 %v304, 4
        %v385 = vpop.permute.xlu0 %384
        %386 = vrot.lane.b32.xlu0 %v305, 4
        %v387 = vpop.permute.xlu0 %386
        %388 = vrot.lane.b32.xlu0 %v306, 4
        %v389 = vpop.permute.xlu0 %388
        %390 = vrot.lane.b32.xlu0 %v307, 4
        %v391 = vpop.permute.xlu0 %390
        %392 = vrot.lane.b32.xlu0 %v308, 4
        %v393 = vpop.permute.xlu0 %392
        %394 = vrot.lane.b32.xlu0 %v309, 4
        %v395 = vpop.permute.xlu0 %394
        %396 = vrot.lane.b32.xlu0 %v310, 4
        %v397 = vpop.permute.xlu0 %396
        %398 = vrot.lane.b32.xlu0 %v311, 4
        %v399 = vpop.permute.xlu0 %398
        %400 = vrot.lane.b32.xlu0 %v312, 4
        %v401 = vpop.permute.xlu0 %400
        %402 = vrot.lane.b32.xlu0 %v313, 4
        %v403 = vpop.permute.xlu0 %402
        %404 = vrot.lane.b32.xlu0 %v314, 4
        %v405 = vpop.permute.xlu0 %404
        %406 = vrot.lane.b32.xlu0 %v315, 4
        %v407 = vpop.permute.xlu0 %406
        %408 = vrot.lane.b32.xlu0 %v316, 4
        %v409 = vpop.permute.xlu0 %408
        %410 = vrot.lane.b32.xlu0 %v317, 4
        %v411 = vpop.permute.xlu0 %410
        %412 = vrot.lane.b32.xlu0 %v318, 4
        %v413 = vpop.permute.xlu0 %412
        %414 = vrot.lane.b32.xlu0 %v319, 4
        %v415 = vpop.permute.xlu0 %414
        %vm448 = vcmask 64544
        %449 = vst.msk [vmem:[#allocation2] sm:$0xff] %vm448, %v353
        %450 = vst.msk [vmem:[#allocation2 + $0x8] sm:$0xff] %vm448, %v355
        %451 = vst.msk [vmem:[#allocation2 + $0x10] sm:$0xff] %vm448, %v357
        %452 = vst.msk [vmem:[#allocation2 + $0x18] sm:$0xff] %vm448, %v359
        %453 = vst.msk [vmem:[#allocation2 + $0x20] sm:$0xff] %vm448, %v361
        %454 = vst.msk [vmem:[#allocation2 + $0x28] sm:$0xff] %vm448, %v363
        %455 = vst.msk [vmem:[#allocation2 + $0x30] sm:$0xff] %vm448, %v365
        %456 = vst.msk [vmem:[#allocation2 + $0x38] sm:$0xff] %vm448, %v367
        %457 = vst.msk [vmem:[#allocation2 + $0x40] sm:$0xff] %vm448, %v369
        %458 = vst.msk [vmem:[#allocation2 + $0x48] sm:$0xff] %vm448, %v371
        %459 = vst.msk [vmem:[#allocation2 + $0x50] sm:$0xff] %vm448, %v373
        %460 = vst.msk [vmem:[#allocation2 + $0x58] sm:$0xff] %vm448, %v375
        %461 = vst.msk [vmem:[#allocation2 + $0x60] sm:$0xff] %vm448, %v377
        %462 = vst.msk [vmem:[#allocation2 + $0x68] sm:$0xff] %vm448, %v379
        %463 = vst.msk [vmem:[#allocation2 + $0x70] sm:$0xff] %vm448, %v381
        %464 = vst.msk [vmem:[#allocation2 + $0x78] sm:$0xff] %vm448, %v383
        %465 = vst.msk [vmem:[#allocation2 + $0x80] sm:$0xff] %vm448, %v385
        %466 = vst.msk [vmem:[#allocation2 + $0x88] sm:$0xff] %vm448, %v387
        %467 = vst.msk [vmem:[#allocation2 + $0x90] sm:$0xff] %vm448, %v389
        %468 = vst.msk [vmem:[#allocation2 + $0x98] sm:$0xff] %vm448, %v391
        %469 = vst.msk [vmem:[#allocation2 + $0xa0] sm:$0xff] %vm448, %v393
        %470 = vst.msk [vmem:[#allocation2 + $0xa8] sm:$0xff] %vm448, %v395
        %471 = vst.msk [vmem:[#allocation2 + $0xb0] sm:$0xff] %vm448, %v397
        %472 = vst.msk [vmem:[#allocation2 + $0xb8] sm:$0xff] %vm448, %v399
        %473 = vst.msk [vmem:[#allocation2 + $0xc0] sm:$0xff] %vm448, %v401
        %474 = vst.msk [vmem:[#allocation2 + $0xc8] sm:$0xff] %vm448, %v403
        %475 = vst.msk [vmem:[#allocation2 + $0xd0] sm:$0xff] %vm448, %v405
        %476 = vst.msk [vmem:[#allocation2 + $0xd8] sm:$0xff] %vm448, %v407
        %477 = vst.msk [vmem:[#allocation2 + $0xe0] sm:$0xff] %vm448, %v409
        %478 = vst.msk [vmem:[#allocation2 + $0xe8] sm:$0xff] %vm448, %v411
        %479 = vst.msk [vmem:[#allocation2 + $0xf0] sm:$0xff] %vm448, %v413
        %480 = vst.msk [vmem:[#allocation2 + $0xf8] sm:$0xff] %vm448, %v415
        %v481 = vld [vmem:[%s221 + $0x2] sm:$0xff]
        %v482 = vld [vmem:[%s221 + $0xa] sm:$0xff]
        %v483 = vld [vmem:[%s221 + $0x1a] sm:$0xff]
        %v484 = vld [vmem:[%s221 + $0x22] sm:$0xff]
        %v485 = vld [vmem:[%s221 + $0x32] sm:$0xff]
        %v486 = vld [vmem:[%s221 + $0x3a] sm:$0xff]
        %v487 = vld [vmem:[%s221 + $0x4a] sm:$0xff]
        %v488 = vld [vmem:[%s221 + $0x52] sm:$0xff]
        %v489 = vld [vmem:[%s221 + $0x62] sm:$0xff]
        %v490 = vld [vmem:[%s221 + $0x6a] sm:$0xff]
        %v491 = vld [vmem:[%s221 + $0x7a] sm:$0xff]
        %v492 = vld [vmem:[%s221 + $0x82] sm:$0xff]
        %v493 = vld [vmem:[%s221 + $0x92] sm:$0xff]
        %v494 = vld [vmem:[%s221 + $0x9a] sm:$0xff]
        %v495 = vld [vmem:[%s221 + $0xaa] sm:$0xff]
        %v496 = vld [vmem:[%s221 + $0xb2] sm:$0xff]
        %v497 = vld [vmem:[%s221 + $0xc2] sm:$0xff]
        %v498 = vld [vmem:[%s221 + $0xca] sm:$0xff]
        %v499 = vld [vmem:[%s221 + $0xda] sm:$0xff]
        %v500 = vld [vmem:[%s221 + $0xe2] sm:$0xff]
        %v501 = vld [vmem:[%s221 + $0xf2] sm:$0xff]
        %v502 = vld [vmem:[%s221 + $0xfa] sm:$0xff]
        %v503 = vld [vmem:[%s221 + $0x10a] sm:$0xff]
        %v504 = vld [vmem:[%s221 + $0x112] sm:$0xff]
        %v505 = vld [vmem:[%s221 + $0x122] sm:$0xff]
        %v506 = vld [vmem:[%s221 + $0x12a] sm:$0xff]
        %v507 = vld [vmem:[%s221 + $0x13a] sm:$0xff]
        %v508 = vld [vmem:[%s221 + $0x142] sm:$0xff]
        %v509 = vld [vmem:[%s221 + $0x152] sm:$0xff]
        %v510 = vld [vmem:[%s221 + $0x15a] sm:$0xff]
        %v511 = vld [vmem:[%s221 + $0x16a] sm:$0xff]
        %v512 = vld [vmem:[%s221 + $0x172] sm:$0xff]
        %545 = vrot.lane.b32.xlu0 %v481, 8
        %v546 = vpop.permute.xlu0 %545
        %547 = vrot.lane.b32.xlu0 %v482, 8
        %v548 = vpop.permute.xlu0 %547
        %549 = vrot.lane.b32.xlu0 %v483, 8
        %v550 = vpop.permute.xlu0 %549
        %551 = vrot.lane.b32.xlu0 %v484, 8
        %v552 = vpop.permute.xlu0 %551
        %553 = vrot.lane.b32.xlu0 %v485, 8
        %v554 = vpop.permute.xlu0 %553
        %555 = vrot.lane.b32.xlu0 %v486, 8
        %v556 = vpop.permute.xlu0 %555
        %557 = vrot.lane.b32.xlu0 %v487, 8
        %v558 = vpop.permute.xlu0 %557
        %559 = vrot.lane.b32.xlu0 %v488, 8
        %v560 = vpop.permute.xlu0 %559
        %561 = vrot.lane.b32.xlu0 %v489, 8
        %v562 = vpop.permute.xlu0 %561
        %563 = vrot.lane.b32.xlu0 %v490, 8
        %v564 = vpop.permute.xlu0 %563
        %565 = vrot.lane.b32.xlu0 %v491, 8
        %v566 = vpop.permute.xlu0 %565
        %567 = vrot.lane.b32.xlu0 %v492, 8
        %v568 = vpop.permute.xlu0 %567
        %569 = vrot.lane.b32.xlu0 %v493, 8
        %v570 = vpop.permute.xlu0 %569
        %571 = vrot.lane.b32.xlu0 %v494, 8
        %v572 = vpop.permute.xlu0 %571
        %573 = vrot.lane.b32.xlu0 %v495, 8
        %v574 = vpop.permute.xlu0 %573
        %575 = vrot.lane.b32.xlu0 %v496, 8
        %v576 = vpop.permute.xlu0 %575
        %577 = vrot.lane.b32.xlu0 %v497, 8
        %v578 = vpop.permute.xlu0 %577
        %579 = vrot.lane.b32.xlu0 %v498, 8
        %v580 = vpop.permute.xlu0 %579
        %581 = vrot.lane.b32.xlu0 %v499, 8
        %v582 = vpop.permute.xlu0 %581
        %583 = vrot.lane.b32.xlu0 %v500, 8
        %v584 = vpop.permute.xlu0 %583
        %585 = vrot.lane.b32.xlu0 %v501, 8
        %v586 = vpop.permute.xlu0 %585
        %587 = vrot.lane.b32.xlu0 %v502, 8
        %v588 = vpop.permute.xlu0 %587
        %589 = vrot.lane.b32.xlu0 %v503, 8
        %v590 = vpop.permute.xlu0 %589
        %591 = vrot.lane.b32.xlu0 %v504, 8
        %v592 = vpop.permute.xlu0 %591
        %593 = vrot.lane.b32.xlu0 %v505, 8
        %v594 = vpop.permute.xlu0 %593
        %595 = vrot.lane.b32.xlu0 %v506, 8
        %v596 = vpop.permute.xlu0 %595
        %597 = vrot.lane.b32.xlu0 %v507, 8
        %v598 = vpop.permute.xlu0 %597
        %599 = vrot.lane.b32.xlu0 %v508, 8
        %v600 = vpop.permute.xlu0 %599
        %601 = vrot.lane.b32.xlu0 %v509, 8
        %v602 = vpop.permute.xlu0 %601
        %603 = vrot.lane.b32.xlu0 %v510, 8
        %v604 = vpop.permute.xlu0 %603
        %605 = vrot.lane.b32.xlu0 %v511, 8
        %v606 = vpop.permute.xlu0 %605
        %607 = vrot.lane.b32.xlu0 %v512, 8
        %v608 = vpop.permute.xlu0 %607
        %vm641 = vcmask 97344
        %642 = vst.msk [vmem:[#allocation2] sm:$0xff] %vm641, %v546
        %643 = vst.msk [vmem:[#allocation2 + $0x8] sm:$0xff] %vm641, %v548
        %644 = vst.msk [vmem:[#allocation2 + $0x10] sm:$0xff] %vm641, %v550
        %645 = vst.msk [vmem:[#allocation2 + $0x18] sm:$0xff] %vm641, %v552
        %646 = vst.msk [vmem:[#allocation2 + $0x20] sm:$0xff] %vm641, %v554
        %647 = vst.msk [vmem:[#allocation2 + $0x28] sm:$0xff] %vm641, %v556
        %648 = vst.msk [vmem:[#allocation2 + $0x30] sm:$0xff] %vm641, %v558
        %649 = vst.msk [vmem:[#allocation2 + $0x38] sm:$0xff] %vm641, %v560
        %650 = vst.msk [vmem:[#allocation2 + $0x40] sm:$0xff] %vm641, %v562
        %651 = vst.msk [vmem:[#allocation2 + $0x48] sm:$0xff] %vm641, %v564
        %652 = vst.msk [vmem:[#allocation2 + $0x50] sm:$0xff] %vm641, %v566
        %653 = vst.msk [vmem:[#allocation2 + $0x58] sm:$0xff] %vm641, %v568
        %654 = vst.msk [vmem:[#allocation2 + $0x60] sm:$0xff] %vm641, %v570
        %655 = vst.msk [vmem:[#allocation2 + $0x68] sm:$0xff] %vm641, %v572
        %656 = vst.msk [vmem:[#allocation2 + $0x70] sm:$0xff] %vm641, %v574
        %657 = vst.msk [vmem:[#allocation2 + $0x78] sm:$0xff] %vm641, %v576
        %658 = vst.msk [vmem:[#allocation2 + $0x80] sm:$0xff] %vm641, %v578
        %659 = vst.msk [vmem:[#allocation2 + $0x88] sm:$0xff] %vm641, %v580
        %660 = vst.msk [vmem:[#allocation2 + $0x90] sm:$0xff] %vm641, %v582
        %661 = vst.msk [vmem:[#allocation2 + $0x98] sm:$0xff] %vm641, %v584
        %662 = vst.msk [vmem:[#allocation2 + $0xa0] sm:$0xff] %vm641, %v586
        %663 = vst.msk [vmem:[#allocation2 + $0xa8] sm:$0xff] %vm641, %v588
        %664 = vst.msk [vmem:[#allocation2 + $0xb0] sm:$0xff] %vm641, %v590
        %665 = vst.msk [vmem:[#allocation2 + $0xb8] sm:$0xff] %vm641, %v592
        %666 = vst.msk [vmem:[#allocation2 + $0xc0] sm:$0xff] %vm641, %v594
        %667 = vst.msk [vmem:[#allocation2 + $0xc8] sm:$0xff] %vm641, %v596
        %668 = vst.msk [vmem:[#allocation2 + $0xd0] sm:$0xff] %vm641, %v598
        %669 = vst.msk [vmem:[#allocation2 + $0xd8] sm:$0xff] %vm641, %v600
        %670 = vst.msk [vmem:[#allocation2 + $0xe0] sm:$0xff] %vm641, %v602
        %671 = vst.msk [vmem:[#allocation2 + $0xe8] sm:$0xff] %vm641, %v604
        %672 = vst.msk [vmem:[#allocation2 + $0xf0] sm:$0xff] %vm641, %v606
        %673 = vst.msk [vmem:[#allocation2 + $0xf8] sm:$0xff] %vm641, %v608
        %s674 = scalar_lea.vmem %s221, 24
        %v675 = vld [vmem:[%s674] sm:$0xff]
        %v676 = vld [vmem:[%s674 + $0x8] sm:$0xff]
        %v677 = vld [vmem:[%s674 + $0x18] sm:$0xff]
        %v678 = vld [vmem:[%s674 + $0x20] sm:$0xff]
        %v679 = vld [vmem:[%s674 + $0x30] sm:$0xff]
        %v680 = vld [vmem:[%s674 + $0x38] sm:$0xff]
        %v681 = vld [vmem:[%s674 + $0x48] sm:$0xff]
        %v682 = vld [vmem:[%s674 + $0x50] sm:$0xff]
        %v683 = vld [vmem:[%s674 + $0x60] sm:$0xff]
        %v684 = vld [vmem:[%s674 + $0x68] sm:$0xff]
        %v685 = vld [vmem:[%s674 + $0x78] sm:$0xff]
        %v686 = vld [vmem:[%s674 + $0x80] sm:$0xff]
        %v687 = vld [vmem:[%s674 + $0x90] sm:$0xff]
        %v688 = vld [vmem:[%s674 + $0x98] sm:$0xff]
        %v689 = vld [vmem:[%s674 + $0xa8] sm:$0xff]
        %v690 = vld [vmem:[%s674 + $0xb0] sm:$0xff]
        %v691 = vld [vmem:[%s674 + $0xc0] sm:$0xff]
        %v692 = vld [vmem:[%s674 + $0xc8] sm:$0xff]
        %v693 = vld [vmem:[%s674 + $0xd8] sm:$0xff]
        %v694 = vld [vmem:[%s674 + $0xe0] sm:$0xff]
        %v695 = vld [vmem:[%s674 + $0xf0] sm:$0xff]
        %v696 = vld [vmem:[%s674 + $0xf8] sm:$0xff]
        %v697 = vld [vmem:[%s674 + $0x108] sm:$0xff]
        %v698 = vld [vmem:[%s674 + $0x110] sm:$0xff]
        %v699 = vld [vmem:[%s674 + $0x120] sm:$0xff]
        %v700 = vld [vmem:[%s674 + $0x128] sm:$0xff]
        %v701 = vld [vmem:[%s674 + $0x138] sm:$0xff]
        %v702 = vld [vmem:[%s674 + $0x140] sm:$0xff]
        %v703 = vld [vmem:[%s674 + $0x150] sm:$0xff]
        %v704 = vld [vmem:[%s674 + $0x158] sm:$0xff]
        %v705 = vld [vmem:[%s674 + $0x168] sm:$0xff]
        %v706 = vld [vmem:[%s674 + $0x170] sm:$0xff]
        %739 = vrot.lane.b32.xlu0 %v675, 12
        %v740 = vpop.permute.xlu0 %739
        %741 = vrot.lane.b32.xlu0 %v676, 12
        %v742 = vpop.permute.xlu0 %741
        %743 = vrot.lane.b32.xlu0 %v677, 12
        %v744 = vpop.permute.xlu0 %743
        %745 = vrot.lane.b32.xlu0 %v678, 12
        %v746 = vpop.permute.xlu0 %745
        %747 = vrot.lane.b32.xlu0 %v679, 12
        %v748 = vpop.permute.xlu0 %747
        %749 = vrot.lane.b32.xlu0 %v680, 12
        %v750 = vpop.permute.xlu0 %749
        %751 = vrot.lane.b32.xlu0 %v681, 12
        %v752 = vpop.permute.xlu0 %751
        %753 = vrot.lane.b32.xlu0 %v682, 12
        %v754 = vpop.permute.xlu0 %753
        %755 = vrot.lane.b32.xlu0 %v683, 12
        %v756 = vpop.permute.xlu0 %755
        %757 = vrot.lane.b32.xlu0 %v684, 12
        %v758 = vpop.permute.xlu0 %757
        %759 = vrot.lane.b32.xlu0 %v685, 12
        %v760 = vpop.permute.xlu0 %759
        %761 = vrot.lane.b32.xlu0 %v686, 12
        %v762 = vpop.permute.xlu0 %761
        %763 = vrot.lane.b32.xlu0 %v687, 12
        %v764 = vpop.permute.xlu0 %763
        %765 = vrot.lane.b32.xlu0 %v688, 12
        %v766 = vpop.permute.xlu0 %765
        %767 = vrot.lane.b32.xlu0 %v689, 12
        %v768 = vpop.permute.xlu0 %767
        %769 = vrot.lane.b32.xlu0 %v690, 12
        %v770 = vpop.permute.xlu0 %769
        %771 = vrot.lane.b32.xlu0 %v691, 12
        %v772 = vpop.permute.xlu0 %771
        %773 = vrot.lane.b32.xlu0 %v692, 12
        %v774 = vpop.permute.xlu0 %773
        %775 = vrot.lane.b32.xlu0 %v693, 12
        %v776 = vpop.permute.xlu0 %775
        %777 = vrot.lane.b32.xlu0 %v694, 12
        %v778 = vpop.permute.xlu0 %777
        %779 = vrot.lane.b32.xlu0 %v695, 12
        %v780 = vpop.permute.xlu0 %779
        %781 = vrot.lane.b32.xlu0 %v696, 12
        %v782 = vpop.permute.xlu0 %781
        %783 = vrot.lane.b32.xlu0 %v697, 12
        %v784 = vpop.permute.xlu0 %783
        %785 = vrot.lane.b32.xlu0 %v698, 12
        %v786 = vpop.permute.xlu0 %785
        %787 = vrot.lane.b32.xlu0 %v699, 12
        %v788 = vpop.permute.xlu0 %787
        %789 = vrot.lane.b32.xlu0 %v700, 12
        %v790 = vpop.permute.xlu0 %789
        %791 = vrot.lane.b32.xlu0 %v701, 12
        %v792 = vpop.permute.xlu0 %791
        %793 = vrot.lane.b32.xlu0 %v702, 12
        %v794 = vpop.permute.xlu0 %793
        %795 = vrot.lane.b32.xlu0 %v703, 12
        %v796 = vpop.permute.xlu0 %795
        %797 = vrot.lane.b32.xlu0 %v704, 12
        %v798 = vpop.permute.xlu0 %797
        %799 = vrot.lane.b32.xlu0 %v705, 12
        %v800 = vpop.permute.xlu0 %799
        %801 = vrot.lane.b32.xlu0 %v706, 12
        %v802 = vpop.permute.xlu0 %801
        %vm835 = vcmask 130144
        %836 = vst.msk [vmem:[#allocation2] sm:$0xff] %vm835, %v740
        %837 = vst.msk [vmem:[#allocation2 + $0x8] sm:$0xff] %vm835, %v742
        %838 = vst.msk [vmem:[#allocation2 + $0x10] sm:$0xff] %vm835, %v744
        %839 = vst.msk [vmem:[#allocation2 + $0x18] sm:$0xff] %vm835, %v746
        %840 = vst.msk [vmem:[#allocation2 + $0x20] sm:$0xff] %vm835, %v748
        %841 = vst.msk [vmem:[#allocation2 + $0x28] sm:$0xff] %vm835, %v750
        %842 = vst.msk [vmem:[#allocation2 + $0x30] sm:$0xff] %vm835, %v752
        %843 = vst.msk [vmem:[#allocation2 + $0x38] sm:$0xff] %vm835, %v754
        %844 = vst.msk [vmem:[#allocation2 + $0x40] sm:$0xff] %vm835, %v756
        %845 = vst.msk [vmem:[#allocation2 + $0x48] sm:$0xff] %vm835, %v758
        %846 = vst.msk [vmem:[#allocation2 + $0x50] sm:$0xff] %vm835, %v760
        %847 = vst.msk [vmem:[#allocation2 + $0x58] sm:$0xff] %vm835, %v762
        %848 = vst.msk [vmem:[#allocation2 + $0x60] sm:$0xff] %vm835, %v764
        %849 = vst.msk [vmem:[#allocation2 + $0x68] sm:$0xff] %vm835, %v766
        %850 = vst.msk [vmem:[#allocation2 + $0x70] sm:$0xff] %vm835, %v768
        %851 = vst.msk [vmem:[#allocation2 + $0x78] sm:$0xff] %vm835, %v770
        %852 = vst.msk [vmem:[#allocation2 + $0x80] sm:$0xff] %vm835, %v772
        %853 = vst.msk [vmem:[#allocation2 + $0x88] sm:$0xff] %vm835, %v774
        %854 = vst.msk [vmem:[#allocation2 + $0x90] sm:$0xff] %vm835, %v776
        %855 = vst.msk [vmem:[#allocation2 + $0x98] sm:$0xff] %vm835, %v778
        %856 = vst.msk [vmem:[#allocation2 + $0xa0] sm:$0xff] %vm835, %v780
        %857 = vst.msk [vmem:[#allocation2 + $0xa8] sm:$0xff] %vm835, %v782
        %858 = vst.msk [vmem:[#allocation2 + $0xb0] sm:$0xff] %vm835, %v784
        %859 = vst.msk [vmem:[#allocation2 + $0xb8] sm:$0xff] %vm835, %v786
        %860 = vst.msk [vmem:[#allocation2 + $0xc0] sm:$0xff] %vm835, %v788
        %861 = vst.msk [vmem:[#allocation2 + $0xc8] sm:$0xff] %vm835, %v790
        %862 = vst.msk [vmem:[#allocation2 + $0xd0] sm:$0xff] %vm835, %v792
        %863 = vst.msk [vmem:[#allocation2 + $0xd8] sm:$0xff] %vm835, %v794
        %864 = vst.msk [vmem:[#allocation2 + $0xe0] sm:$0xff] %vm835, %v796
        %865 = vst.msk [vmem:[#allocation2 + $0xe8] sm:$0xff] %vm835, %v798
        %866 = vst.msk [vmem:[#allocation2 + $0xf0] sm:$0xff] %vm835, %v800
        %867 = vst.msk [vmem:[#allocation2 + $0xf8] sm:$0xff] %vm835, %v802
        %v868 = vld [vmem:[%s674 + $0x1] sm:$0xff]
        %v869 = vld [vmem:[%s674 + $0x9] sm:$0xff]
        %v870 = vld [vmem:[%s674 + $0x19] sm:$0xff]
        %v871 = vld [vmem:[%s674 + $0x21] sm:$0xff]
        %v872 = vld [vmem:[%s674 + $0x31] sm:$0xff]
        %v873 = vld [vmem:[%s674 + $0x39] sm:$0xff]
        %v874 = vld [vmem:[%s674 + $0x49] sm:$0xff]
        %v875 = vld [vmem:[%s674 + $0x51] sm:$0xff]
        %v876 = vld [vmem:[%s674 + $0x61] sm:$0xff]
        %v877 = vld [vmem:[%s674 + $0x69] sm:$0xff]
        %v878 = vld [vmem:[%s674 + $0x79] sm:$0xff]
        %v879 = vld [vmem:[%s674 + $0x81] sm:$0xff]
        %v880 = vld [vmem:[%s674 + $0x91] sm:$0xff]
        %v881 = vld [vmem:[%s674 + $0x99] sm:$0xff]
        %v882 = vld [vmem:[%s674 + $0xa9] sm:$0xff]
        %v883 = vld [vmem:[%s674 + $0xb1] sm:$0xff]
        %v884 = vld [vmem:[%s674 + $0xc1] sm:$0xff]
        %v885 = vld [vmem:[%s674 + $0xc9] sm:$0xff]
        %v886 = vld [vmem:[%s674 + $0xd9] sm:$0xff]
        %v887 = vld [vmem:[%s674 + $0xe1] sm:$0xff]
        %v888 = vld [vmem:[%s674 + $0xf1] sm:$0xff]
        %v889 = vld [vmem:[%s674 + $0xf9] sm:$0xff]
        %v890 = vld [vmem:[%s674 + $0x109] sm:$0xff]
        %v891 = vld [vmem:[%s674 + $0x111] sm:$0xff]
        %v892 = vld [vmem:[%s674 + $0x121] sm:$0xff]
        %v893 = vld [vmem:[%s674 + $0x129] sm:$0xff]
        %v894 = vld [vmem:[%s674 + $0x139] sm:$0xff]
        %v895 = vld [vmem:[%s674 + $0x141] sm:$0xff]
        %v896 = vld [vmem:[%s674 + $0x151] sm:$0xff]
        %v897 = vld [vmem:[%s674 + $0x159] sm:$0xff]
        %v898 = vld [vmem:[%s674 + $0x169] sm:$0xff]
        %v899 = vld [vmem:[%s674 + $0x171] sm:$0xff]
        %932 = vrot.lane.b32.xlu0 %v868, 16
        %v933 = vpop.permute.xlu0 %932
        %934 = vrot.lane.b32.xlu0 %v869, 16
        %v935 = vpop.permute.xlu0 %934
        %936 = vrot.lane.b32.xlu0 %v870, 16
        %v937 = vpop.permute.xlu0 %936
        %938 = vrot.lane.b32.xlu0 %v871, 16
        %v939 = vpop.permute.xlu0 %938
        %940 = vrot.lane.b32.xlu0 %v872, 16
        %v941 = vpop.permute.xlu0 %940
        %942 = vrot.lane.b32.xlu0 %v873, 16
        %v943 = vpop.permute.xlu0 %942
        %944 = vrot.lane.b32.xlu0 %v874, 16
        %v945 = vpop.permute.xlu0 %944
        %946 = vrot.lane.b32.xlu0 %v875, 16
        %v947 = vpop.permute.xlu0 %946
        %948 = vrot.lane.b32.xlu0 %v876, 16
        %v949 = vpop.permute.xlu0 %948
        %950 = vrot.lane.b32.xlu0 %v877, 16
        %v951 = vpop.permute.xlu0 %950
        %952 = vrot.lane.b32.xlu0 %v878, 16
        %v953 = vpop.permute.xlu0 %952
        %954 = vrot.lane.b32.xlu0 %v879, 16
        %v955 = vpop.permute.xlu0 %954
        %956 = vrot.lane.b32.xlu0 %v880, 16
        %v957 = vpop.permute.xlu0 %956
        %958 = vrot.lane.b32.xlu0 %v881, 16
        %v959 = vpop.permute.xlu0 %958
        %960 = vrot.lane.b32.xlu0 %v882, 16
        %v961 = vpop.permute.xlu0 %960
        %962 = vrot.lane.b32.xlu0 %v883, 16
        %v963 = vpop.permute.xlu0 %962
        %964 = vrot.lane.b32.xlu0 %v884, 16
        %v965 = vpop.permute.xlu0 %964
        %966 = vrot.lane.b32.xlu0 %v885, 16
        %v967 = vpop.permute.xlu0 %966
        %968 = vrot.lane.b32.xlu0 %v886, 16
        %v969 = vpop.permute.xlu0 %968
        %970 = vrot.lane.b32.xlu0 %v887, 16
        %v971 = vpop.permute.xlu0 %970
        %972 = vrot.lane.b32.xlu0 %v888, 16
        %v973 = vpop.permute.xlu0 %972
        %974 = vrot.lane.b32.xlu0 %v889, 16
        %v975 = vpop.permute.xlu0 %974
        %976 = vrot.lane.b32.xlu0 %v890, 16
        %v977 = vpop.permute.xlu0 %976
        %978 = vrot.lane.b32.xlu0 %v891, 16
        %v979 = vpop.permute.xlu0 %978
        %980 = vrot.lane.b32.xlu0 %v892, 16
        %v981 = vpop.permute.xlu0 %980
        %982 = vrot.lane.b32.xlu0 %v893, 16
        %v983 = vpop.permute.xlu0 %982
        %984 = vrot.lane.b32.xlu0 %v894, 16
        %v985 = vpop.permute.xlu0 %984
        %986 = vrot.lane.b32.xlu0 %v895, 16
        %v987 = vpop.permute.xlu0 %986
        %988 = vrot.lane.b32.xlu0 %v896, 16
        %v989 = vpop.permute.xlu0 %988
        %990 = vrot.lane.b32.xlu0 %v897, 16
        %v991 = vpop.permute.xlu0 %990
        %992 = vrot.lane.b32.xlu0 %v898, 16
        %v993 = vpop.permute.xlu0 %992
        %994 = vrot.lane.b32.xlu0 %v899, 16
        %v995 = vpop.permute.xlu0 %994
        %vm1028 = vcmask 162944
        %1029 = vst.msk [vmem:[#allocation2] sm:$0xff] %vm1028, %v933
        %1030 = vst.msk [vmem:[#allocation2 + $0x8] sm:$0xff] %vm1028, %v935
        %1031 = vst.msk [vmem:[#allocation2 + $0x10] sm:$0xff] %vm1028, %v937
        %1032 = vst.msk [vmem:[#allocation2 + $0x18] sm:$0xff] %vm1028, %v939
        %1033 = vst.msk [vmem:[#allocation2 + $0x20] sm:$0xff] %vm1028, %v941
        %1034 = vst.msk [vmem:[#allocation2 + $0x28] sm:$0xff] %vm1028, %v943
        %1035 = vst.msk [vmem:[#allocation2 + $0x30] sm:$0xff] %vm1028, %v945
        %1036 = vst.msk [vmem:[#allocation2 + $0x38] sm:$0xff] %vm1028, %v947
        %1037 = vst.msk [vmem:[#allocation2 + $0x40] sm:$0xff] %vm1028, %v949
        %1038 = vst.msk [vmem:[#allocation2 + $0x48] sm:$0xff] %vm1028, %v951
        %1039 = vst.msk [vmem:[#allocation2 + $0x50] sm:$0xff] %vm1028, %v953
        %1040 = vst.msk [vmem:[#allocation2 + $0x58] sm:$0xff] %vm1028, %v955
        %1041 = vst.msk [vmem:[#allocation2 + $0x60] sm:$0xff] %vm1028, %v957
        %1042 = vst.msk [vmem:[#allocation2 + $0x68] sm:$0xff] %vm1028, %v959
        %1043 = vst.msk [vmem:[#allocation2 + $0x70] sm:$0xff] %vm1028, %v961
        %1044 = vst.msk [vmem:[#allocation2 + $0x78] sm:$0xff] %vm1028, %v963
        %1045 = vst.msk [vmem:[#allocation2 + $0x80] sm:$0xff] %vm1028, %v965
        %1046 = vst.msk [vmem:[#allocation2 + $0x88] sm:$0xff] %vm1028, %v967
        %1047 = vst.msk [vmem:[#allocation2 + $0x90] sm:$0xff] %vm1028, %v969
        %1048 = vst.msk [vmem:[#allocation2 + $0x98] sm:$0xff] %vm1028, %v971
        %1049 = vst.msk [vmem:[#allocation2 + $0xa0] sm:$0xff] %vm1028, %v973
        %1050 = vst.msk [vmem:[#allocation2 + $0xa8] sm:$0xff] %vm1028, %v975
        %1051 = vst.msk [vmem:[#allocation2 + $0xb0] sm:$0xff] %vm1028, %v977
        %1052 = vst.msk [vmem:[#allocation2 + $0xb8] sm:$0xff] %vm1028, %v979
        %1053 = vst.msk [vmem:[#allocation2 + $0xc0] sm:$0xff] %vm1028, %v981
        %1054 = vst.msk [vmem:[#allocation2 + $0xc8] sm:$0xff] %vm1028, %v983
        %1055 = vst.msk [vmem:[#allocation2 + $0xd0] sm:$0xff] %vm1028, %v985
        %1056 = vst.msk [vmem:[#allocation2 + $0xd8] sm:$0xff] %vm1028, %v987
        %1057 = vst.msk [vmem:[#allocation2 + $0xe0] sm:$0xff] %vm1028, %v989
        %1058 = vst.msk [vmem:[#allocation2 + $0xe8] sm:$0xff] %vm1028, %v991
        %1059 = vst.msk [vmem:[#allocation2 + $0xf0] sm:$0xff] %vm1028, %v993
        %1060 = vst.msk [vmem:[#allocation2 + $0xf8] sm:$0xff] %vm1028, %v995
        %v1061 = vld [vmem:[%s674 + $0x2] sm:$0xff]
        %v1062 = vld [vmem:[%s674 + $0xa] sm:$0xff]
        %v1063 = vld [vmem:[%s674 + $0x1a] sm:$0xff]
        %v1064 = vld [vmem:[%s674 + $0x22] sm:$0xff]
        %v1065 = vld [vmem:[%s674 + $0x32] sm:$0xff]
        %v1066 = vld [vmem:[%s674 + $0x3a] sm:$0xff]
        %v1067 = vld [vmem:[%s674 + $0x4a] sm:$0xff]
        %v1068 = vld [vmem:[%s674 + $0x52] sm:$0xff]
        %v1069 = vld [vmem:[%s674 + $0x62] sm:$0xff]
        %v1070 = vld [vmem:[%s674 + $0x6a] sm:$0xff]
        %v1071 = vld [vmem:[%s674 + $0x7a] sm:$0xff]
        %v1072 = vld [vmem:[%s674 + $0x82] sm:$0xff]
        %v1073 = vld [vmem:[%s674 + $0x92] sm:$0xff]
        %v1074 = vld [vmem:[%s674 + $0x9a] sm:$0xff]
        %v1075 = vld [vmem:[%s674 + $0xaa] sm:$0xff]
        %v1076 = vld [vmem:[%s674 + $0xb2] sm:$0xff]
        %v1077 = vld [vmem:[%s674 + $0xc2] sm:$0xff]
        %v1078 = vld [vmem:[%s674 + $0xca] sm:$0xff]
        %v1079 = vld [vmem:[%s674 + $0xda] sm:$0xff]
        %v1080 = vld [vmem:[%s674 + $0xe2] sm:$0xff]
        %v1081 = vld [vmem:[%s674 + $0xf2] sm:$0xff]
        %v1082 = vld [vmem:[%s674 + $0xfa] sm:$0xff]
        %v1083 = vld [vmem:[%s674 + $0x10a] sm:$0xff]
        %v1084 = vld [vmem:[%s674 + $0x112] sm:$0xff]
        %v1085 = vld [vmem:[%s674 + $0x122] sm:$0xff]
        %v1086 = vld [vmem:[%s674 + $0x12a] sm:$0xff]
        %v1087 = vld [vmem:[%s674 + $0x13a] sm:$0xff]
        %v1088 = vld [vmem:[%s674 + $0x142] sm:$0xff]
        %v1089 = vld [vmem:[%s674 + $0x152] sm:$0xff]
        %v1090 = vld [vmem:[%s674 + $0x15a] sm:$0xff]
        %v1091 = vld [vmem:[%s674 + $0x16a] sm:$0xff]
        %v1092 = vld [vmem:[%s674 + $0x172] sm:$0xff]
        %1125 = vrot.lane.b32.xlu0 %v1061, 20
        %v1126 = vpop.permute.xlu0 %1125
        %1127 = vrot.lane.b32.xlu0 %v1062, 20
        %v1128 = vpop.permute.xlu0 %1127
        %1129 = vrot.lane.b32.xlu0 %v1063, 20
        %v1130 = vpop.permute.xlu0 %1129
        %1131 = vrot.lane.b32.xlu0 %v1064, 20
        %v1132 = vpop.permute.xlu0 %1131
        %1133 = vrot.lane.b32.xlu0 %v1065, 20
        %v1134 = vpop.permute.xlu0 %1133
        %1135 = vrot.lane.b32.xlu0 %v1066, 20
        %v1136 = vpop.permute.xlu0 %1135
        %1137 = vrot.lane.b32.xlu0 %v1067, 20
        %v1138 = vpop.permute.xlu0 %1137
        %1139 = vrot.lane.b32.xlu0 %v1068, 20
        %v1140 = vpop.permute.xlu0 %1139
        %1141 = vrot.lane.b32.xlu0 %v1069, 20
        %v1142 = vpop.permute.xlu0 %1141
        %1143 = vrot.lane.b32.xlu0 %v1070, 20
        %v1144 = vpop.permute.xlu0 %1143
        %1145 = vrot.lane.b32.xlu0 %v1071, 20
        %v1146 = vpop.permute.xlu0 %1145
        %1147 = vrot.lane.b32.xlu0 %v1072, 20
        %v1148 = vpop.permute.xlu0 %1147
        %1149 = vrot.lane.b32.xlu0 %v1073, 20
        %v1150 = vpop.permute.xlu0 %1149
        %1151 = vrot.lane.b32.xlu0 %v1074, 20
        %v1152 = vpop.permute.xlu0 %1151
        %1153 = vrot.lane.b32.xlu0 %v1075, 20
        %v1154 = vpop.permute.xlu0 %1153
        %1155 = vrot.lane.b32.xlu0 %v1076, 20
        %v1156 = vpop.permute.xlu0 %1155
        %1157 = vrot.lane.b32.xlu0 %v1077, 20
        %v1158 = vpop.permute.xlu0 %1157
        %1159 = vrot.lane.b32.xlu0 %v1078, 20
        %v1160 = vpop.permute.xlu0 %1159
        %1161 = vrot.lane.b32.xlu0 %v1079, 20
        %v1162 = vpop.permute.xlu0 %1161
        %1163 = vrot.lane.b32.xlu0 %v1080, 20
        %v1164 = vpop.permute.xlu0 %1163
        %1165 = vrot.lane.b32.xlu0 %v1081, 20
        %v1166 = vpop.permute.xlu0 %1165
        %1167 = vrot.lane.b32.xlu0 %v1082, 20
        %v1168 = vpop.permute.xlu0 %1167
        %1169 = vrot.lane.b32.xlu0 %v1083, 20
        %v1170 = vpop.permute.xlu0 %1169
        %1171 = vrot.lane.b32.xlu0 %v1084, 20
        %v1172 = vpop.permute.xlu0 %1171
        %1173 = vrot.lane.b32.xlu0 %v1085, 20
        %v1174 = vpop.permute.xlu0 %1173
        %1175 = vrot.lane.b32.xlu0 %v1086, 20
        %v1176 = vpop.permute.xlu0 %1175
        %1177 = vrot.lane.b32.xlu0 %v1087, 20
        %v1178 = vpop.permute.xlu0 %1177
        %1179 = vrot.lane.b32.xlu0 %v1088, 20
        %v1180 = vpop.permute.xlu0 %1179
        %1181 = vrot.lane.b32.xlu0 %v1089, 20
        %v1182 = vpop.permute.xlu0 %1181
        %1183 = vrot.lane.b32.xlu0 %v1090, 20
        %v1184 = vpop.permute.xlu0 %1183
        %1185 = vrot.lane.b32.xlu0 %v1091, 20
        %v1186 = vpop.permute.xlu0 %1185
        %1187 = vrot.lane.b32.xlu0 %v1092, 20
        %v1188 = vpop.permute.xlu0 %1187
        %vm1221 = vcmask 195744
        %1222 = vst.msk [vmem:[#allocation2] sm:$0xff] %vm1221, %v1126
        %1223 = vst.msk [vmem:[#allocation2 + $0x8] sm:$0xff] %vm1221, %v1128
        %1224 = vst.msk [vmem:[#allocation2 + $0x10] sm:$0xff] %vm1221, %v1130
        %1225 = vst.msk [vmem:[#allocation2 + $0x18] sm:$0xff] %vm1221, %v1132
        %1226 = vst.msk [vmem:[#allocation2 + $0x20] sm:$0xff] %vm1221, %v1134
        %1227 = vst.msk [vmem:[#allocation2 + $0x28] sm:$0xff] %vm1221, %v1136
        %1228 = vst.msk [vmem:[#allocation2 + $0x30] sm:$0xff] %vm1221, %v1138
        %1229 = vst.msk [vmem:[#allocation2 + $0x38] sm:$0xff] %vm1221, %v1140
        %1230 = vst.msk [vmem:[#allocation2 + $0x40] sm:$0xff] %vm1221, %v1142
        %1231 = vst.msk [vmem:[#allocation2 + $0x48] sm:$0xff] %vm1221, %v1144
        %1232 = vst.msk [vmem:[#allocation2 + $0x50] sm:$0xff] %vm1221, %v1146
        %1233 = vst.msk [vmem:[#allocation2 + $0x58] sm:$0xff] %vm1221, %v1148
        %1234 = vst.msk [vmem:[#allocation2 + $0x60] sm:$0xff] %vm1221, %v1150
        %1235 = vst.msk [vmem:[#allocation2 + $0x68] sm:$0xff] %vm1221, %v1152
        %1236 = vst.msk [vmem:[#allocation2 + $0x70] sm:$0xff] %vm1221, %v1154
        %1237 = vst.msk [vmem:[#allocation2 + $0x78] sm:$0xff] %vm1221, %v1156
        %1238 = vst.msk [vmem:[#allocation2 + $0x80] sm:$0xff] %vm1221, %v1158
        %1239 = vst.msk [vmem:[#allocation2 + $0x88] sm:$0xff] %vm1221, %v1160
        %1240 = vst.msk [vmem:[#allocation2 + $0x90] sm:$0xff] %vm1221, %v1162
        %1241 = vst.msk [vmem:[#allocation2 + $0x98] sm:$0xff] %vm1221, %v1164
        %1242 = vst.msk [vmem:[#allocation2 + $0xa0] sm:$0xff] %vm1221, %v1166
        %1243 = vst.msk [vmem:[#allocation2 + $0xa8] sm:$0xff] %vm1221, %v1168
        %1244 = vst.msk [vmem:[#allocation2 + $0xb0] sm:$0xff] %vm1221, %v1170
        %1245 = vst.msk [vmem:[#allocation2 + $0xb8] sm:$0xff] %vm1221, %v1172
        %1246 = vst.msk [vmem:[#allocation2 + $0xc0] sm:$0xff] %vm1221, %v1174
        %1247 = vst.msk [vmem:[#allocation2 + $0xc8] sm:$0xff] %vm1221, %v1176
        %1248 = vst.msk [vmem:[#allocation2 + $0xd0] sm:$0xff] %vm1221, %v1178
        %1249 = vst.msk [vmem:[#allocation2 + $0xd8] sm:$0xff] %vm1221, %v1180
        %1250 = vst.msk [vmem:[#allocation2 + $0xe0] sm:$0xff] %vm1221, %v1182
        %1251 = vst.msk [vmem:[#allocation2 + $0xe8] sm:$0xff] %vm1221, %v1184
        %1252 = vst.msk [vmem:[#allocation2 + $0xf0] sm:$0xff] %vm1221, %v1186
        %1253 = vst.msk [vmem:[#allocation2 + $0xf8] sm:$0xff] %vm1221, %v1188
        %s1254 = scalar_lea.vmem %s221, 48
        %v1255 = vld [vmem:[%s1254] sm:$0xff]
        %v1256 = vld [vmem:[%s1254 + $0x8] sm:$0xff]
        %v1257 = vld [vmem:[%s1254 + $0x18] sm:$0xff]
        %v1258 = vld [vmem:[%s1254 + $0x20] sm:$0xff]
        %v1259 = vld [vmem:[%s1254 + $0x30] sm:$0xff]
        %v1260 = vld [vmem:[%s1254 + $0x38] sm:$0xff]
        %v1261 = vld [vmem:[%s1254 + $0x48] sm:$0xff]
        %v1262 = vld [vmem:[%s1254 + $0x50] sm:$0xff]
        %v1263 = vld [vmem:[%s1254 + $0x60] sm:$0xff]
        %v1264 = vld [vmem:[%s1254 + $0x68] sm:$0xff]
        %v1265 = vld [vmem:[%s1254 + $0x78] sm:$0xff]
        %v1266 = vld [vmem:[%s1254 + $0x80] sm:$0xff]
        %v1267 = vld [vmem:[%s1254 + $0x90] sm:$0xff]
        %v1268 = vld [vmem:[%s1254 + $0x98] sm:$0xff]
        %v1269 = vld [vmem:[%s1254 + $0xa8] sm:$0xff]
        %v1270 = vld [vmem:[%s1254 + $0xb0] sm:$0xff]
        %v1271 = vld [vmem:[%s1254 + $0xc0] sm:$0xff]
        %v1272 = vld [vmem:[%s1254 + $0xc8] sm:$0xff]
        %v1273 = vld [vmem:[%s1254 + $0xd8] sm:$0xff]
        %v1274 = vld [vmem:[%s1254 + $0xe0] sm:$0xff]
        %v1275 = vld [vmem:[%s1254 + $0xf0] sm:$0xff]
        %v1276 = vld [vmem:[%s1254 + $0xf8] sm:$0xff]
        %v1277 = vld [vmem:[%s1254 + $0x108] sm:$0xff]
        %v1278 = vld [vmem:[%s1254 + $0x110] sm:$0xff]
        %v1279 = vld [vmem:[%s1254 + $0x120] sm:$0xff]
        %v1280 = vld [vmem:[%s1254 + $0x128] sm:$0xff]
        %v1281 = vld [vmem:[%s1254 + $0x138] sm:$0xff]
        %v1282 = vld [vmem:[%s1254 + $0x140] sm:$0xff]
        %v1283 = vld [vmem:[%s1254 + $0x150] sm:$0xff]
        %v1284 = vld [vmem:[%s1254 + $0x158] sm:$0xff]
        %v1285 = vld [vmem:[%s1254 + $0x168] sm:$0xff]
        %v1286 = vld [vmem:[%s1254 + $0x170] sm:$0xff]
        %1319 = vrot.lane.b32.xlu0 %v1255, 24
        %v1320 = vpop.permute.xlu0 %1319
        %1321 = vrot.lane.b32.xlu0 %v1256, 24
        %v1322 = vpop.permute.xlu0 %1321
        %1323 = vrot.lane.b32.xlu0 %v1257, 24
        %v1324 = vpop.permute.xlu0 %1323
        %1325 = vrot.lane.b32.xlu0 %v1258, 24
        %v1326 = vpop.permute.xlu0 %1325
        %1327 = vrot.lane.b32.xlu0 %v1259, 24
        %v1328 = vpop.permute.xlu0 %1327
        %1329 = vrot.lane.b32.xlu0 %v1260, 24
        %v1330 = vpop.permute.xlu0 %1329
        %1331 = vrot.lane.b32.xlu0 %v1261, 24
        %v1332 = vpop.permute.xlu0 %1331
        %1333 = vrot.lane.b32.xlu0 %v1262, 24
        %v1334 = vpop.permute.xlu0 %1333
        %1335 = vrot.lane.b32.xlu0 %v1263, 24
        %v1336 = vpop.permute.xlu0 %1335
        %1337 = vrot.lane.b32.xlu0 %v1264, 24
        %v1338 = vpop.permute.xlu0 %1337
        %1339 = vrot.lane.b32.xlu0 %v1265, 24
        %v1340 = vpop.permute.xlu0 %1339
        %1341 = vrot.lane.b32.xlu0 %v1266, 24
        %v1342 = vpop.permute.xlu0 %1341
        %1343 = vrot.lane.b32.xlu0 %v1267, 24
        %v1344 = vpop.permute.xlu0 %1343
        %1345 = vrot.lane.b32.xlu0 %v1268, 24
        %v1346 = vpop.permute.xlu0 %1345
        %1347 = vrot.lane.b32.xlu0 %v1269, 24
        %v1348 = vpop.permute.xlu0 %1347
        %1349 = vrot.lane.b32.xlu0 %v1270, 24
        %v1350 = vpop.permute.xlu0 %1349
        %1351 = vrot.lane.b32.xlu0 %v1271, 24
        %v1352 = vpop.permute.xlu0 %1351
        %1353 = vrot.lane.b32.xlu0 %v1272, 24
        %v1354 = vpop.permute.xlu0 %1353
        %1355 = vrot.lane.b32.xlu0 %v1273, 24
        %v1356 = vpop.permute.xlu0 %1355
        %1357 = vrot.lane.b32.xlu0 %v1274, 24
        %v1358 = vpop.permute.xlu0 %1357
        %1359 = vrot.lane.b32.xlu0 %v1275, 24
        %v1360 = vpop.permute.xlu0 %1359
        %1361 = vrot.lane.b32.xlu0 %v1276, 24
        %v1362 = vpop.permute.xlu0 %1361
        %1363 = vrot.lane.b32.xlu0 %v1277, 24
        %v1364 = vpop.permute.xlu0 %1363
        %1365 = vrot.lane.b32.xlu0 %v1278, 24
        %v1366 = vpop.permute.xlu0 %1365
        %1367 = vrot.lane.b32.xlu0 %v1279, 24
        %v1368 = vpop.permute.xlu0 %1367
        %1369 = vrot.lane.b32.xlu0 %v1280, 24
        %v1370 = vpop.permute.xlu0 %1369
        %1371 = vrot.lane.b32.xlu0 %v1281, 24
        %v1372 = vpop.permute.xlu0 %1371
        %1373 = vrot.lane.b32.xlu0 %v1282, 24
        %v1374 = vpop.permute.xlu0 %1373
        %1375 = vrot.lane.b32.xlu0 %v1283, 24
        %v1376 = vpop.permute.xlu0 %1375
        %1377 = vrot.lane.b32.xlu0 %v1284, 24
        %v1378 = vpop.permute.xlu0 %1377
        %1379 = vrot.lane.b32.xlu0 %v1285, 24
        %v1380 = vpop.permute.xlu0 %1379
        %1381 = vrot.lane.b32.xlu0 %v1286, 24
        %v1382 = vpop.permute.xlu0 %1381
        %vm1415 = vcmask 228544
        %1416 = vst.msk [vmem:[#allocation2] sm:$0xff] %vm1415, %v1320
        %1417 = vst.msk [vmem:[#allocation2 + $0x8] sm:$0xff] %vm1415, %v1322
        %1418 = vst.msk [vmem:[#allocation2 + $0x10] sm:$0xff] %vm1415, %v1324
        %1419 = vst.msk [vmem:[#allocation2 + $0x18] sm:$0xff] %vm1415, %v1326
        %1420 = vst.msk [vmem:[#allocation2 + $0x20] sm:$0xff] %vm1415, %v1328
        %1421 = vst.msk [vmem:[#allocation2 + $0x28] sm:$0xff] %vm1415, %v1330
        %1422 = vst.msk [vmem:[#allocation2 + $0x30] sm:$0xff] %vm1415, %v1332
        %1423 = vst.msk [vmem:[#allocation2 + $0x38] sm:$0xff] %vm1415, %v1334
        %1424 = vst.msk [vmem:[#allocation2 + $0x40] sm:$0xff] %vm1415, %v1336
        %1425 = vst.msk [vmem:[#allocation2 + $0x48] sm:$0xff] %vm1415, %v1338
        %1426 = vst.msk [vmem:[#allocation2 + $0x50] sm:$0xff] %vm1415, %v1340
        %1427 = vst.msk [vmem:[#allocation2 + $0x58] sm:$0xff] %vm1415, %v1342
        %1428 = vst.msk [vmem:[#allocation2 + $0x60] sm:$0xff] %vm1415, %v1344
        %1429 = vst.msk [vmem:[#allocation2 + $0x68] sm:$0xff] %vm1415, %v1346
        %1430 = vst.msk [vmem:[#allocation2 + $0x70] sm:$0xff] %vm1415, %v1348
        %1431 = vst.msk [vmem:[#allocation2 + $0x78] sm:$0xff] %vm1415, %v1350
        %1432 = vst.msk [vmem:[#allocation2 + $0x80] sm:$0xff] %vm1415, %v1352
        %1433 = vst.msk [vmem:[#allocation2 + $0x88] sm:$0xff] %vm1415, %v1354
        %1434 = vst.msk [vmem:[#allocation2 + $0x90] sm:$0xff] %vm1415, %v1356
        %1435 = vst.msk [vmem:[#allocation2 + $0x98] sm:$0xff] %vm1415, %v1358
        %1436 = vst.msk [vmem:[#allocation2 + $0xa0] sm:$0xff] %vm1415, %v1360
        %1437 = vst.msk [vmem:[#allocation2 + $0xa8] sm:$0xff] %vm1415, %v1362
        %1438 = vst.msk [vmem:[#allocation2 + $0xb0] sm:$0xff] %vm1415, %v1364
        %1439 = vst.msk [vmem:[#allocation2 + $0xb8] sm:$0xff] %vm1415, %v1366
        %1440 = vst.msk [vmem:[#allocation2 + $0xc0] sm:$0xff] %vm1415, %v1368
        %1441 = vst.msk [vmem:[#allocation2 + $0xc8] sm:$0xff] %vm1415, %v1370
        %1442 = vst.msk [vmem:[#allocation2 + $0xd0] sm:$0xff] %vm1415, %v1372
        %1443 = vst.msk [vmem:[#allocation2 + $0xd8] sm:$0xff] %vm1415, %v1374
        %1444 = vst.msk [vmem:[#allocation2 + $0xe0] sm:$0xff] %vm1415, %v1376
        %1445 = vst.msk [vmem:[#allocation2 + $0xe8] sm:$0xff] %vm1415, %v1378
        %1446 = vst.msk [vmem:[#allocation2 + $0xf0] sm:$0xff] %vm1415, %v1380
        %1447 = vst.msk [vmem:[#allocation2 + $0xf8] sm:$0xff] %vm1415, %v1382
        %v1448 = vld [vmem:[%s1254 + $0x1] sm:$0xff]
        %v1449 = vld [vmem:[%s1254 + $0x9] sm:$0xff]
        %v1450 = vld [vmem:[%s1254 + $0x19] sm:$0xff]
        %v1451 = vld [vmem:[%s1254 + $0x21] sm:$0xff]
        %v1452 = vld [vmem:[%s1254 + $0x31] sm:$0xff]
        %v1453 = vld [vmem:[%s1254 + $0x39] sm:$0xff]
        %v1454 = vld [vmem:[%s1254 + $0x49] sm:$0xff]
        %v1455 = vld [vmem:[%s1254 + $0x51] sm:$0xff]
        %v1456 = vld [vmem:[%s1254 + $0x61] sm:$0xff]
        %v1457 = vld [vmem:[%s1254 + $0x69] sm:$0xff]
        %v1458 = vld [vmem:[%s1254 + $0x79] sm:$0xff]
        %v1459 = vld [vmem:[%s1254 + $0x81] sm:$0xff]
        %v1460 = vld [vmem:[%s1254 + $0x91] sm:$0xff]
        %v1461 = vld [vmem:[%s1254 + $0x99] sm:$0xff]
        %v1462 = vld [vmem:[%s1254 + $0xa9] sm:$0xff]
        %v1463 = vld [vmem:[%s1254 + $0xb1] sm:$0xff]
        %v1464 = vld [vmem:[%s1254 + $0xc1] sm:$0xff]
        %v1465 = vld [vmem:[%s1254 + $0xc9] sm:$0xff]
        %v1466 = vld [vmem:[%s1254 + $0xd9] sm:$0xff]
        %v1467 = vld [vmem:[%s1254 + $0xe1] sm:$0xff]
        %v1468 = vld [vmem:[%s1254 + $0xf1] sm:$0xff]
        %v1469 = vld [vmem:[%s1254 + $0xf9] sm:$0xff]
        %v1470 = vld [vmem:[%s1254 + $0x109] sm:$0xff]
        %v1471 = vld [vmem:[%s1254 + $0x111] sm:$0xff]
        %v1472 = vld [vmem:[%s1254 + $0x121] sm:$0xff]
        %v1473 = vld [vmem:[%s1254 + $0x129] sm:$0xff]
        %v1474 = vld [vmem:[%s1254 + $0x139] sm:$0xff]
        %v1475 = vld [vmem:[%s1254 + $0x141] sm:$0xff]
        %v1476 = vld [vmem:[%s1254 + $0x151] sm:$0xff]
        %v1477 = vld [vmem:[%s1254 + $0x159] sm:$0xff]
        %v1478 = vld [vmem:[%s1254 + $0x169] sm:$0xff]
        %v1479 = vld [vmem:[%s1254 + $0x171] sm:$0xff]
        %1512 = vrot.lane.b32.xlu0 %v1448, 28
        %v1513 = vpop.permute.xlu0 %1512
        %1514 = vrot.lane.b32.xlu0 %v1449, 28
        %v1515 = vpop.permute.xlu0 %1514
        %1516 = vrot.lane.b32.xlu0 %v1450, 28
        %v1517 = vpop.permute.xlu0 %1516
        %1518 = vrot.lane.b32.xlu0 %v1451, 28
        %v1519 = vpop.permute.xlu0 %1518
        %1520 = vrot.lane.b32.xlu0 %v1452, 28
        %v1521 = vpop.permute.xlu0 %1520
        %1522 = vrot.lane.b32.xlu0 %v1453, 28
        %v1523 = vpop.permute.xlu0 %1522
        %1524 = vrot.lane.b32.xlu0 %v1454, 28
        %v1525 = vpop.permute.xlu0 %1524
        %1526 = vrot.lane.b32.xlu0 %v1455, 28
        %v1527 = vpop.permute.xlu0 %1526
        %1528 = vrot.lane.b32.xlu0 %v1456, 28
        %v1529 = vpop.permute.xlu0 %1528
        %1530 = vrot.lane.b32.xlu0 %v1457, 28
        %v1531 = vpop.permute.xlu0 %1530
        %1532 = vrot.lane.b32.xlu0 %v1458, 28
        %v1533 = vpop.permute.xlu0 %1532
        %1534 = vrot.lane.b32.xlu0 %v1459, 28
        %v1535 = vpop.permute.xlu0 %1534
        %1536 = vrot.lane.b32.xlu0 %v1460, 28
        %v1537 = vpop.permute.xlu0 %1536
        %1538 = vrot.lane.b32.xlu0 %v1461, 28
        %v1539 = vpop.permute.xlu0 %1538
        %1540 = vrot.lane.b32.xlu0 %v1462, 28
        %v1541 = vpop.permute.xlu0 %1540
        %1542 = vrot.lane.b32.xlu0 %v1463, 28
        %v1543 = vpop.permute.xlu0 %1542
        %1544 = vrot.lane.b32.xlu0 %v1464, 28
        %v1545 = vpop.permute.xlu0 %1544
        %1546 = vrot.lane.b32.xlu0 %v1465, 28
        %v1547 = vpop.permute.xlu0 %1546
        %1548 = vrot.lane.b32.xlu0 %v1466, 28
        %v1549 = vpop.permute.xlu0 %1548
        %1550 = vrot.lane.b32.xlu0 %v1467, 28
        %v1551 = vpop.permute.xlu0 %1550
        %1552 = vrot.lane.b32.xlu0 %v1468, 28
        %v1553 = vpop.permute.xlu0 %1552
        %1554 = vrot.lane.b32.xlu0 %v1469, 28
        %v1555 = vpop.permute.xlu0 %1554
        %1556 = vrot.lane.b32.xlu0 %v1470, 28
        %v1557 = vpop.permute.xlu0 %1556
        %1558 = vrot.lane.b32.xlu0 %v1471, 28
        %v1559 = vpop.permute.xlu0 %1558
        %1560 = vrot.lane.b32.xlu0 %v1472, 28
        %v1561 = vpop.permute.xlu0 %1560
        %1562 = vrot.lane.b32.xlu0 %v1473, 28
        %v1563 = vpop.permute.xlu0 %1562
        %1564 = vrot.lane.b32.xlu0 %v1474, 28
        %v1565 = vpop.permute.xlu0 %1564
        %1566 = vrot.lane.b32.xlu0 %v1475, 28
        %v1567 = vpop.permute.xlu0 %1566
        %1568 = vrot.lane.b32.xlu0 %v1476, 28
        %v1569 = vpop.permute.xlu0 %1568
        %1570 = vrot.lane.b32.xlu0 %v1477, 28
        %v1571 = vpop.permute.xlu0 %1570
        %1572 = vrot.lane.b32.xlu0 %v1478, 28
        %v1573 = vpop.permute.xlu0 %1572
        %1574 = vrot.lane.b32.xlu0 %v1479, 28
        %v1575 = vpop.permute.xlu0 %1574
        %vm1608 = vcmask 261344
        %1609 = vst.msk [vmem:[#allocation2] sm:$0xff] %vm1608, %v1513
        %1610 = vst.msk [vmem:[#allocation2 + $0x8] sm:$0xff] %vm1608, %v1515
        %1611 = vst.msk [vmem:[#allocation2 + $0x10] sm:$0xff] %vm1608, %v1517
        %1612 = vst.msk [vmem:[#allocation2 + $0x18] sm:$0xff] %vm1608, %v1519
        %1613 = vst.msk [vmem:[#allocation2 + $0x20] sm:$0xff] %vm1608, %v1521
        %1614 = vst.msk [vmem:[#allocation2 + $0x28] sm:$0xff] %vm1608, %v1523
        %1615 = vst.msk [vmem:[#allocation2 + $0x30] sm:$0xff] %vm1608, %v1525
        %1616 = vst.msk [vmem:[#allocation2 + $0x38] sm:$0xff] %vm1608, %v1527
        %1617 = vst.msk [vmem:[#allocation2 + $0x40] sm:$0xff] %vm1608, %v1529
        %1618 = vst.msk [vmem:[#allocation2 + $0x48] sm:$0xff] %vm1608, %v1531
        %1619 = vst.msk [vmem:[#allocation2 + $0x50] sm:$0xff] %vm1608, %v1533
        %1620 = vst.msk [vmem:[#allocation2 + $0x58] sm:$0xff] %vm1608, %v1535
        %1621 = vst.msk [vmem:[#allocation2 + $0x60] sm:$0xff] %vm1608, %v1537
        %1622 = vst.msk [vmem:[#allocation2 + $0x68] sm:$0xff] %vm1608, %v1539
        %1623 = vst.msk [vmem:[#allocation2 + $0x70] sm:$0xff] %vm1608, %v1541
        %1624 = vst.msk [vmem:[#allocation2 + $0x78] sm:$0xff] %vm1608, %v1543
        %1625 = vst.msk [vmem:[#allocation2 + $0x80] sm:$0xff] %vm1608, %v1545
        %1626 = vst.msk [vmem:[#allocation2 + $0x88] sm:$0xff] %vm1608, %v1547
        %1627 = vst.msk [vmem:[#allocation2 + $0x90] sm:$0xff] %vm1608, %v1549
        %1628 = vst.msk [vmem:[#allocation2 + $0x98] sm:$0xff] %vm1608, %v1551
        %1629 = vst.msk [vmem:[#allocation2 + $0xa0] sm:$0xff] %vm1608, %v1553
        %1630 = vst.msk [vmem:[#allocation2 + $0xa8] sm:$0xff] %vm1608, %v1555
        %1631 = vst.msk [vmem:[#allocation2 + $0xb0] sm:$0xff] %vm1608, %v1557
        %1632 = vst.msk [vmem:[#allocation2 + $0xb8] sm:$0xff] %vm1608, %v1559
        %1633 = vst.msk [vmem:[#allocation2 + $0xc0] sm:$0xff] %vm1608, %v1561
        %1634 = vst.msk [vmem:[#allocation2 + $0xc8] sm:$0xff] %vm1608, %v1563
        %1635 = vst.msk [vmem:[#allocation2 + $0xd0] sm:$0xff] %vm1608, %v1565
        %1636 = vst.msk [vmem:[#allocation2 + $0xd8] sm:$0xff] %vm1608, %v1567
        %1637 = vst.msk [vmem:[#allocation2 + $0xe0] sm:$0xff] %vm1608, %v1569
        %1638 = vst.msk [vmem:[#allocation2 + $0xe8] sm:$0xff] %vm1608, %v1571
        %1639 = vst.msk [vmem:[#allocation2 + $0xf0] sm:$0xff] %vm1608, %v1573
        %1640 = vst.msk [vmem:[#allocation2 + $0xf8] sm:$0xff] %vm1608, %v1575
        %v1641 = vld [vmem:[%s1254 + $0x2] sm:$0xff]
        %v1642 = vld [vmem:[%s1254 + $0xa] sm:$0xff]
        %v1643 = vld [vmem:[%s1254 + $0x1a] sm:$0xff]
        %v1644 = vld [vmem:[%s1254 + $0x22] sm:$0xff]
        %v1645 = vld [vmem:[%s1254 + $0x32] sm:$0xff]
        %v1646 = vld [vmem:[%s1254 + $0x3a] sm:$0xff]
        %v1647 = vld [vmem:[%s1254 + $0x4a] sm:$0xff]
        %v1648 = vld [vmem:[%s1254 + $0x52] sm:$0xff]
        %v1649 = vld [vmem:[%s1254 + $0x62] sm:$0xff]
        %v1650 = vld [vmem:[%s1254 + $0x6a] sm:$0xff]
        %v1651 = vld [vmem:[%s1254 + $0x7a] sm:$0xff]
        %v1652 = vld [vmem:[%s1254 + $0x82] sm:$0xff]
        %v1653 = vld [vmem:[%s1254 + $0x92] sm:$0xff]
        %v1654 = vld [vmem:[%s1254 + $0x9a] sm:$0xff]
        %v1655 = vld [vmem:[%s1254 + $0xaa] sm:$0xff]
        %v1656 = vld [vmem:[%s1254 + $0xb2] sm:$0xff]
        %v1657 = vld [vmem:[%s1254 + $0xc2] sm:$0xff]
        %v1658 = vld [vmem:[%s1254 + $0xca] sm:$0xff]
        %v1659 = vld [vmem:[%s1254 + $0xda] sm:$0xff]
        %v1660 = vld [vmem:[%s1254 + $0xe2] sm:$0xff]
        %v1661 = vld [vmem:[%s1254 + $0xf2] sm:$0xff]
        %v1662 = vld [vmem:[%s1254 + $0xfa] sm:$0xff]
        %v1663 = vld [vmem:[%s1254 + $0x10a] sm:$0xff]
        %v1664 = vld [vmem:[%s1254 + $0x112] sm:$0xff]
        %v1665 = vld [vmem:[%s1254 + $0x122] sm:$0xff]
        %v1666 = vld [vmem:[%s1254 + $0x12a] sm:$0xff]
        %v1667 = vld [vmem:[%s1254 + $0x13a] sm:$0xff]
        %v1668 = vld [vmem:[%s1254 + $0x142] sm:$0xff]
        %v1669 = vld [vmem:[%s1254 + $0x152] sm:$0xff]
        %v1670 = vld [vmem:[%s1254 + $0x15a] sm:$0xff]
        %v1671 = vld [vmem:[%s1254 + $0x16a] sm:$0xff]
        %v1672 = vld [vmem:[%s1254 + $0x172] sm:$0xff]
        %1705 = vrot.lane.b32.xlu0 %v1641, 32
        %v1706 = vpop.permute.xlu0 %1705
        %1707 = vrot.lane.b32.xlu0 %v1642, 32
        %v1708 = vpop.permute.xlu0 %1707
        %1709 = vrot.lane.b32.xlu0 %v1643, 32
        %v1710 = vpop.permute.xlu0 %1709
        %1711 = vrot.lane.b32.xlu0 %v1644, 32
        %v1712 = vpop.permute.xlu0 %1711
        %1713 = vrot.lane.b32.xlu0 %v1645, 32
        %v1714 = vpop.permute.xlu0 %1713
        %1715 = vrot.lane.b32.xlu0 %v1646, 32
        %v1716 = vpop.permute.xlu0 %1715
        %1717 = vrot.lane.b32.xlu0 %v1647, 32
        %v1718 = vpop.permute.xlu0 %1717
        %1719 = vrot.lane.b32.xlu0 %v1648, 32
        %v1720 = vpop.permute.xlu0 %1719
        %1721 = vrot.lane.b32.xlu0 %v1649, 32
        %v1722 = vpop.permute.xlu0 %1721
        %1723 = vrot.lane.b32.xlu0 %v1650, 32
        %v1724 = vpop.permute.xlu0 %1723
        %1725 = vrot.lane.b32.xlu0 %v1651, 32
        %v1726 = vpop.permute.xlu0 %1725
        %1727 = vrot.lane.b32.xlu0 %v1652, 32
        %v1728 = vpop.permute.xlu0 %1727
        %1729 = vrot.lane.b32.xlu0 %v1653, 32
        %v1730 = vpop.permute.xlu0 %1729
        %1731 = vrot.lane.b32.xlu0 %v1654, 32
        %v1732 = vpop.permute.xlu0 %1731
        %1733 = vrot.lane.b32.xlu0 %v1655, 32
        %v1734 = vpop.permute.xlu0 %1733
        %1735 = vrot.lane.b32.xlu0 %v1656, 32
        %v1736 = vpop.permute.xlu0 %1735
        %1737 = vrot.lane.b32.xlu0 %v1657, 32
        %v1738 = vpop.permute.xlu0 %1737
        %1739 = vrot.lane.b32.xlu0 %v1658, 32
        %v1740 = vpop.permute.xlu0 %1739
        %1741 = vrot.lane.b32.xlu0 %v1659, 32
        %v1742 = vpop.permute.xlu0 %1741
        %1743 = vrot.lane.b32.xlu0 %v1660, 32
        %v1744 = vpop.permute.xlu0 %1743
        %1745 = vrot.lane.b32.xlu0 %v1661, 32
        %v1746 = vpop.permute.xlu0 %1745
        %1747 = vrot.lane.b32.xlu0 %v1662, 32
        %v1748 = vpop.permute.xlu0 %1747
        %1749 = vrot.lane.b32.xlu0 %v1663, 32
        %v1750 = vpop.permute.xlu0 %1749
        %1751 = vrot.lane.b32.xlu0 %v1664, 32
        %v1752 = vpop.permute.xlu0 %1751
        %1753 = vrot.lane.b32.xlu0 %v1665, 32
        %v1754 = vpop.permute.xlu0 %1753
        %1755 = vrot.lane.b32.xlu0 %v1666, 32
        %v1756 = vpop.permute.xlu0 %1755
        %1757 = vrot.lane.b32.xlu0 %v1667, 32
        %v1758 = vpop.permute.xlu0 %1757
        %1759 = vrot.lane.b32.xlu0 %v1668, 32
        %v1760 = vpop.permute.xlu0 %1759
        %1761 = vrot.lane.b32.xlu0 %v1669, 32
        %v1762 = vpop.permute.xlu0 %1761
        %1763 = vrot.lane.b32.xlu0 %v1670, 32
        %v1764 = vpop.permute.xlu0 %1763
        %1765 = vrot.lane.b32.xlu0 %v1671, 32
        %v1766 = vpop.permute.xlu0 %1765
        %1767 = vrot.lane.b32.xlu0 %v1672, 32
        %v1768 = vpop.permute.xlu0 %1767
        %vm1801 = vcmask 294144
        %1802 = vst.msk [vmem:[#allocation2] sm:$0xff] %vm1801, %v1706
        %1803 = vst.msk [vmem:[#allocation2 + $0x8] sm:$0xff] %vm1801, %v1708
        %1804 = vst.msk [vmem:[#allocation2 + $0x10] sm:$0xff] %vm1801, %v1710
        %1805 = vst.msk [vmem:[#allocation2 + $0x18] sm:$0xff] %vm1801, %v1712
        %1806 = vst.msk [vmem:[#allocation2 + $0x20] sm:$0xff] %vm1801, %v1714
        %1807 = vst.msk [vmem:[#allocation2 + $0x28] sm:$0xff] %vm1801, %v1716
        %1808 = vst.msk [vmem:[#allocation2 + $0x30] sm:$0xff] %vm1801, %v1718
        %1809 = vst.msk [vmem:[#allocation2 + $0x38] sm:$0xff] %vm1801, %v1720
        %1810 = vst.msk [vmem:[#allocation2 + $0x40] sm:$0xff] %vm1801, %v1722
        %1811 = vst.msk [vmem:[#allocation2 + $0x48] sm:$0xff] %vm1801, %v1724
        %1812 = vst.msk [vmem:[#allocation2 + $0x50] sm:$0xff] %vm1801, %v1726
        %1813 = vst.msk [vmem:[#allocation2 + $0x58] sm:$0xff] %vm1801, %v1728
        %1814 = vst.msk [vmem:[#allocation2 + $0x60] sm:$0xff] %vm1801, %v1730
        %1815 = vst.msk [vmem:[#allocation2 + $0x68] sm:$0xff] %vm1801, %v1732
        %1816 = vst.msk [vmem:[#allocation2 + $0x70] sm:$0xff] %vm1801, %v1734
        %1817 = vst.msk [vmem:[#allocation2 + $0x78] sm:$0xff] %vm1801, %v1736
        %1818 = vst.msk [vmem:[#allocation2 + $0x80] sm:$0xff] %vm1801, %v1738
        %1819 = vst.msk [vmem:[#allocation2 + $0x88] sm:$0xff] %vm1801, %v1740
        %1820 = vst.msk [vmem:[#allocation2 + $0x90] sm:$0xff] %vm1801, %v1742
        %1821 = vst.msk [vmem:[#allocation2 + $0x98] sm:$0xff] %vm1801, %v1744
        %1822 = vst.msk [vmem:[#allocation2 + $0xa0] sm:$0xff] %vm1801, %v1746
        %1823 = vst.msk [vmem:[#allocation2 + $0xa8] sm:$0xff] %vm1801, %v1748
        %1824 = vst.msk [vmem:[#allocation2 + $0xb0] sm:$0xff] %vm1801, %v1750
        %1825 = vst.msk [vmem:[#allocation2 + $0xb8] sm:$0xff] %vm1801, %v1752
        %1826 = vst.msk [vmem:[#allocation2 + $0xc0] sm:$0xff] %vm1801, %v1754
        %1827 = vst.msk [vmem:[#allocation2 + $0xc8] sm:$0xff] %vm1801, %v1756
        %1828 = vst.msk [vmem:[#allocation2 + $0xd0] sm:$0xff] %vm1801, %v1758
        %1829 = vst.msk [vmem:[#allocation2 + $0xd8] sm:$0xff] %vm1801, %v1760
        %1830 = vst.msk [vmem:[#allocation2 + $0xe0] sm:$0xff] %vm1801, %v1762
        %1831 = vst.msk [vmem:[#allocation2 + $0xe8] sm:$0xff] %vm1801, %v1764
        %1832 = vst.msk [vmem:[#allocation2 + $0xf0] sm:$0xff] %vm1801, %v1766
        %1833 = vst.msk [vmem:[#allocation2 + $0xf8] sm:$0xff] %vm1801, %v1768
        %v1834 = vld [vmem:[#allocation2] sm:$0xff]
        %v1835 = vld [vmem:[#allocation2 + $0x8] sm:$0xff]
        %v1836 = vld [vmem:[#allocation2 + $0x10] sm:$0xff]
        %v1837 = vld [vmem:[#allocation2 + $0x18] sm:$0xff]
        %v1838 = vld [vmem:[#allocation2 + $0x20] sm:$0xff]
        %v1839 = vld [vmem:[#allocation2 + $0x28] sm:$0xff]
        %v1840 = vld [vmem:[#allocation2 + $0x30] sm:$0xff]
        %v1841 = vld [vmem:[#allocation2 + $0x38] sm:$0xff]
        %v1842 = vld [vmem:[#allocation2 + $0x40] sm:$0xff]
        %v1843 = vld [vmem:[#allocation2 + $0x48] sm:$0xff]
        %v1844 = vld [vmem:[#allocation2 + $0x50] sm:$0xff]
        %v1845 = vld [vmem:[#allocation2 + $0x58] sm:$0xff]
        %v1846 = vld [vmem:[#allocation2 + $0x60] sm:$0xff]
        %v1847 = vld [vmem:[#allocation2 + $0x68] sm:$0xff]
        %v1848 = vld [vmem:[#allocation2 + $0x70] sm:$0xff]
        %v1849 = vld [vmem:[#allocation2 + $0x78] sm:$0xff]
        %v1850 = vld [vmem:[#allocation2 + $0x80] sm:$0xff]
        %v1851 = vld [vmem:[#allocation2 + $0x88] sm:$0xff]
        %v1852 = vld [vmem:[#allocation2 + $0x90] sm:$0xff]
        %v1853 = vld [vmem:[#allocation2 + $0x98] sm:$0xff]
        %v1854 = vld [vmem:[#allocation2 + $0xa0] sm:$0xff]
        %v1855 = vld [vmem:[#allocation2 + $0xa8] sm:$0xff]
        %v1856 = vld [vmem:[#allocation2 + $0xb0] sm:$0xff]
        %v1857 = vld [vmem:[#allocation2 + $0xb8] sm:$0xff]
        %v1858 = vld [vmem:[#allocation2 + $0xc0] sm:$0xff]
        %v1859 = vld [vmem:[#allocation2 + $0xc8] sm:$0xff]
        %v1860 = vld [vmem:[#allocation2 + $0xd0] sm:$0xff]
        %v1861 = vld [vmem:[#allocation2 + $0xd8] sm:$0xff]
        %v1862 = vld [vmem:[#allocation2 + $0xe0] sm:$0xff]
        %v1863 = vld [vmem:[#allocation2 + $0xe8] sm:$0xff]
        %v1864 = vld [vmem:[#allocation2 + $0xf0] sm:$0xff]
        %v1865 = vld [vmem:[#allocation2 + $0xf8] sm:$0xff]
        %v1866 = vpack.c.bf16 %v1835, %v1834
        %v1867 = vpack.c.bf16 %v1837, %v1836
        %v1868 = vpack.c.bf16 %v1839, %v1838
        %v1869 = vpack.c.bf16 %v1841, %v1840
        %v1870 = vpack.c.bf16 %v1843, %v1842
        %v1871 = vpack.c.bf16 %v1845, %v1844
        %v1872 = vpack.c.bf16 %v1847, %v1846
        %v1873 = vpack.c.bf16 %v1849, %v1848
        %v1874 = vpack.c.bf16 %v1851, %v1850
        %v1875 = vpack.c.bf16 %v1853, %v1852
        %v1876 = vpack.c.bf16 %v1855, %v1854
        %v1877 = vpack.c.bf16 %v1857, %v1856
        %v1878 = vpack.c.bf16 %v1859, %v1858
        %v1879 = vpack.c.bf16 %v1861, %v1860
        %v1880 = vpack.c.bf16 %v1863, %v1862
        %v1881 = vpack.c.bf16 %v1865, %v1864
        %v1882 = vld [vmem:[%s1] sm:$0xf]
        %v1883 = vld [vmem:[%s1 + $0x4] sm:$0xf]
        %v1884 = vld [vmem:[%s1 + $0x8] sm:$0xf]
        %v1885 = vld [vmem:[%s1 + $0xc] sm:$0xf]
        %v1886 = vld [vmem:[%s1 + $0x10] sm:$0x3]
        %v1887 = vld [vmem:[%s2] sm:$0x1]
        %v1889 = vlaneseq
        %v1890 = vshrl.u32 %v1889, 7
        %v1891 = vsub.s32 0, %v1890
        %v1892 = vrot.slane %v1887, %v1891
        %v1899 = vunpack.c.l.b16 %v1882
        %v1900 = vunpack.c.l.b16 %v1883
        %v1901 = vunpack.c.l.b16 %v1884
        %v1902 = vunpack.c.l.b16 %v1885
        %v1903 = vunpack.c.l.b16 %v1886
        %v1904 = vpack.c.b16 %v1900, %v1899
        %v1905 = vpack.c.b16 %v1902, %v1901
        %v1906 = vpack.c.b16 %v1903, %v1903
        %vm1909 = vcmask 293888
        %v1911 = vsel %vm1909, %v1866, 0
        %v1914 = vsel %vm1909, %v1867, 0
        %v1917 = vsel %vm1909, %v1868, 0
        %v1920 = vsel %vm1909, %v1869, 0
        %v1923 = vsel %vm1909, %v1870, 0
        %v1926 = vsel %vm1909, %v1871, 0
        %v1929 = vsel %vm1909, %v1872, 0
        %v1932 = vsel %vm1909, %v1873, 0
        %v1935 = vsel %vm1909, %v1874, 0
        %v1938 = vsel %vm1909, %v1875, 0
        %v1941 = vsel %vm1909, %v1876, 0
        %v1944 = vsel %vm1909, %v1877, 0
        %v1947 = vsel %vm1909, %v1878, 0
        %v1950 = vsel %vm1909, %v1879, 0
        %v1953 = vsel %vm1909, %v1880, 0
        %v1956 = vsel %vm1909, %v1881, 0
        %vm1958 = vcmask 1041408
        %v1960 = vsel %vm1958, %v1906, 0
        %1962 = vmatprep.subr.bf16.mxu0 0
        %1963 = vmatpush1.bf16.msra.mxu0 %v1904
        %1964 = vmatprep.subr.bf16.mxu0 0
        %1965 = vmatpush1.bf16.msra.mxu0 %v1905
        %1966 = vmatprep.subr.bf16.mxu0 0
        %1967 = vmatpush1.bf16.msra.mxu0 %v1960
        %1968 = vmatprep.subr.bf16.mxu0 0
        %1969 = vmatpush1.bf16.msra.mxu0 0
        %1970 = vmatprep.subr.bf16.mxu0 0
        %1971 = vmatpush1.bf16.msra.mxu0 0
        %1972 = vmatprep.subr.bf16.mxu0 0
        %1973 = vmatpush1.bf16.msra.mxu0 0
        %1974 = vmatprep.subr.bf16.mxu0 0
        %1975 = vmatpush1.bf16.msra.mxu0 0
        %1976 = vmatprep.subr.bf16.mxu0 0
        %1977 = vmatpush1.bf16.msra.mxu0 0
        %1978 = vmatprep.subr.bf16.mxu0 0
        %1979 = vmatpush1.bf16.msra.mxu0 0
        %1980 = vmatprep.subr.bf16.mxu0 0
        %1981 = vmatpush1.bf16.msra.mxu0 0
        %1982 = vmatprep.subr.bf16.mxu0 0
        %1983 = vmatpush1.bf16.msra.mxu0 0
        %1984 = vmatprep.subr.bf16.mxu0 0
        %1985 = vmatpush1.bf16.msra.mxu0 0
        %1986 = vmatprep.subr.bf16.mxu0 0
        %1987 = vmatpush1.bf16.msra.mxu0 0
        %1988 = vmatprep.subr.bf16.mxu0 0
        %1989 = vmatpush1.bf16.msra.mxu0 0
        %1990 = vmatprep.subr.bf16.mxu0 0
        %1991 = vmatpush1.bf16.msra.mxu0 0
        %1992 = vmatprep.subr.bf16.mxu0 0
        %1993 = vmatpush1.bf16.msra.mxu0 0
        %1994 = vmatprep.mubr.bf16.mxu0 0
        %1995 = vmatmul.mubr.bf16.gmra.mrb[0].mxu0 %v1911
        %v1996 = vpop.f32.mrb[0].mxu0
        %v1997 = vadd.f32 %v1892, %v1996
        %v1998 = vpop.f32.mrb[0].mxu0
        %v1999 = vpop.f32.mrb[0].mxu0
        %v2000 = vadd.f32 %v1892, %v1999
        %v2001 = vpop.f32.mrb[0].mxu0
        %2002 = vmatprep.mubr.bf16.mxu0 0
        %2003 = vmatmul.mubr.bf16.gmra.mrb[0].mxu0 %v1914
        %v2004 = vpop.f32.mrb[0].mxu0
        %v2005 = vadd.f32 %v1892, %v2004
        %v2006 = vpop.f32.mrb[0].mxu0
        %v2007 = vpop.f32.mrb[0].mxu0
        %v2008 = vadd.f32 %v1892, %v2007
        %v2009 = vpop.f32.mrb[0].mxu0
        %2010 = vmatprep.mubr.bf16.mxu0 0
        %2011 = vmatmul.mubr.bf16.gmra.mrb[0].mxu0 %v1917
        %v2012 = vpop.f32.mrb[0].mxu0
        %v2013 = vadd.f32 %v1892, %v2012
        %v2014 = vpop.f32.mrb[0].mxu0
        %v2015 = vpop.f32.mrb[0].mxu0
        %v2016 = vadd.f32 %v1892, %v2015
        %v2017 = vpop.f32.mrb[0].mxu0
        %2018 = vmatprep.mubr.bf16.mxu0 0
        %2019 = vmatmul.mubr.bf16.gmra.mrb[0].mxu0 %v1920
        %v2020 = vpop.f32.mrb[0].mxu0
        %v2021 = vadd.f32 %v1892, %v2020
        %v2022 = vpop.f32.mrb[0].mxu0
        %v2023 = vpop.f32.mrb[0].mxu0
        %v2024 = vadd.f32 %v1892, %v2023
        %v2025 = vpop.f32.mrb[0].mxu0
        %2026 = vmatprep.mubr.bf16.mxu0 0
        %2027 = vmatmul.mubr.bf16.gmra.mrb[0].mxu0 %v1923
        %v2028 = vpop.f32.mrb[0].mxu0
        %v2029 = vadd.f32 %v1892, %v2028
        %v2030 = vpop.f32.mrb[0].mxu0
        %v2031 = vpop.f32.mrb[0].mxu0
        %v2032 = vadd.f32 %v1892, %v2031
        %v2033 = vpop.f32.mrb[0].mxu0
        %2034 = vmatprep.mubr.bf16.mxu0 0
        %2035 = vmatmul.mubr.bf16.gmra.mrb[0].mxu0 %v1926
        %v2036 = vpop.f32.mrb[0].mxu0
        %v2037 = vadd.f32 %v1892, %v2036
        %v2038 = vpop.f32.mrb[0].mxu0
        %v2039 = vpop.f32.mrb[0].mxu0
        %v2040 = vadd.f32 %v1892, %v2039
        %v2041 = vpop.f32.mrb[0].mxu0
        %2042 = vmatprep.mubr.bf16.mxu0 0
        %2043 = vmatmul.mubr.bf16.gmra.mrb[0].mxu0 %v1929
        %v2044 = vpop.f32.mrb[0].mxu0
        %v2045 = vadd.f32 %v1892, %v2044
        %v2046 = vpop.f32.mrb[0].mxu0
        %v2047 = vpop.f32.mrb[0].mxu0
        %v2048 = vadd.f32 %v1892, %v2047
        %v2049 = vpop.f32.mrb[0].mxu0
        %2050 = vmatprep.mubr.bf16.mxu0 0
        %2051 = vmatmul.mubr.bf16.gmra.mrb[0].mxu0 %v1932
        %v2052 = vpop.f32.mrb[0].mxu0
        %v2053 = vadd.f32 %v1892, %v2052
        %v2054 = vpop.f32.mrb[0].mxu0
        %v2055 = vpop.f32.mrb[0].mxu0
        %v2056 = vadd.f32 %v1892, %v2055
        %v2057 = vpop.f32.mrb[0].mxu0
        %2058 = vmatprep.mubr.bf16.mxu0 0
        %2059 = vmatmul.mubr.bf16.gmra.mrb[0].mxu0 %v1935
        %v2060 = vpop.f32.mrb[0].mxu0
        %v2061 = vadd.f32 %v1892, %v2060
        %v2062 = vpop.f32.mrb[0].mxu0
        %v2063 = vpop.f32.mrb[0].mxu0
        %v2064 = vadd.f32 %v1892, %v2063
        %v2065 = vpop.f32.mrb[0].mxu0
        %2066 = vmatprep.mubr.bf16.mxu0 0
        %2067 = vmatmul.mubr.bf16.gmra.mrb[0].mxu0 %v1938
        %v2068 = vpop.f32.mrb[0].mxu0
        %v2069 = vadd.f32 %v1892, %v2068
        %v2070 = vpop.f32.mrb[0].mxu0
        %v2071 = vpop.f32.mrb[0].mxu0
        %v2072 = vadd.f32 %v1892, %v2071
        %v2073 = vpop.f32.mrb[0].mxu0
        %2074 = vmatprep.mubr.bf16.mxu0 0
        %2075 = vmatmul.mubr.bf16.gmra.mrb[0].mxu0 %v1941
        %v2076 = vpop.f32.mrb[0].mxu0
        %v2077 = vadd.f32 %v1892, %v2076
        %v2078 = vpop.f32.mrb[0].mxu0
        %v2079 = vpop.f32.mrb[0].mxu0
        %v2080 = vadd.f32 %v1892, %v2079
        %v2081 = vpop.f32.mrb[0].mxu0
        %2082 = vmatprep.mubr.bf16.mxu0 0
        %2083 = vmatmul.mubr.bf16.gmra.mrb[0].mxu0 %v1944
        %v2084 = vpop.f32.mrb[0].mxu0
        %v2085 = vadd.f32 %v1892, %v2084
        %v2086 = vpop.f32.mrb[0].mxu0
        %v2087 = vpop.f32.mrb[0].mxu0
        %v2088 = vadd.f32 %v1892, %v2087
        %v2089 = vpop.f32.mrb[0].mxu0
        %2090 = vmatprep.mubr.bf16.mxu0 0
        %2091 = vmatmul.mubr.bf16.gmra.mrb[0].mxu0 %v1947
        %v2092 = vpop.f32.mrb[0].mxu0
        %v2093 = vadd.f32 %v1892, %v2092
        %v2094 = vpop.f32.mrb[0].mxu0
        %v2095 = vpop.f32.mrb[0].mxu0
        %v2096 = vadd.f32 %v1892, %v2095
        %v2097 = vpop.f32.mrb[0].mxu0
        %2098 = vmatprep.mubr.bf16.mxu0 0
        %2099 = vmatmul.mubr.bf16.gmra.mrb[0].mxu0 %v1950
        %v2100 = vpop.f32.mrb[0].mxu0
        %v2101 = vadd.f32 %v1892, %v2100
        %v2102 = vpop.f32.mrb[0].mxu0
        %v2103 = vpop.f32.mrb[0].mxu0
        %v2104 = vadd.f32 %v1892, %v2103
        %v2105 = vpop.f32.mrb[0].mxu0
        %2106 = vmatprep.mubr.bf16.mxu0 0
        %2107 = vmatmul.mubr.bf16.gmra.mrb[0].mxu0 %v1953
        %v2108 = vpop.f32.mrb[0].mxu0
        %v2109 = vadd.f32 %v1892, %v2108
        %v2110 = vpop.f32.mrb[0].mxu0
        %v2111 = vpop.f32.mrb[0].mxu0
        %v2112 = vadd.f32 %v1892, %v2111
        %v2113 = vpop.f32.mrb[0].mxu0
        %2114 = vmatprep.mubr.bf16.mxu0 0
        %2115 = vmatmul.mubr.bf16.gmra.mrb[0].mxu0 %v1956
        %v2116 = vpop.f32.mrb[0].mxu0
        %v2117 = vadd.f32 %v1892, %v2116
        %v2118 = vpop.f32.mrb[0].mxu0
        %v2119 = vpop.f32.mrb[0].mxu0
        %v2120 = vadd.f32 %v1892, %v2119
        %v2121 = vpop.f32.mrb[0].mxu0
        %2122 = vdwg.mxu0
        %v2123 = vmax.f32 %v1997, 0.0
        %v2124 = vmax.f32 %v2000, 0.0
        %v2125 = vmax.f32 %v2005, 0.0
        %v2126 = vmax.f32 %v2008, 0.0
        %v2127 = vmax.f32 %v2013, 0.0
        %v2128 = vmax.f32 %v2016, 0.0
        %v2129 = vmax.f32 %v2021, 0.0
        %v2130 = vmax.f32 %v2024, 0.0
        %v2131 = vmax.f32 %v2029, 0.0
        %v2132 = vmax.f32 %v2032, 0.0
        %v2133 = vmax.f32 %v2037, 0.0
        %v2134 = vmax.f32 %v2040, 0.0
        %v2135 = vmax.f32 %v2045, 0.0
        %v2136 = vmax.f32 %v2048, 0.0
        %v2137 = vmax.f32 %v2053, 0.0
        %v2138 = vmax.f32 %v2056, 0.0
        %v2139 = vmax.f32 %v2061, 0.0
        %v2140 = vmax.f32 %v2064, 0.0
        %v2141 = vmax.f32 %v2069, 0.0
        %v2142 = vmax.f32 %v2072, 0.0
        %v2143 = vmax.f32 %v2077, 0.0
        %v2144 = vmax.f32 %v2080, 0.0
        %v2145 = vmax.f32 %v2085, 0.0
        %v2146 = vmax.f32 %v2088, 0.0
        %v2147 = vmax.f32 %v2093, 0.0
        %v2148 = vmax.f32 %v2096, 0.0
        %v2149 = vmax.f32 %v2101, 0.0
        %v2150 = vmax.f32 %v2104, 0.0
        %v2151 = vmax.f32 %v2109, 0.0
        %v2152 = vmax.f32 %v2112, 0.0
        %v2153 = vmax.f32 %v2117, 0.0
        %v2154 = vmax.f32 %v2120, 0.0
        %v2155 = vadd.f32 %v2123, %v2124
        %v2156 = vadd.f32 %v2155, %v2125
        %v2157 = vadd.f32 %v2156, %v2126
        %v2158 = vadd.f32 %v2157, %v2127
        %v2159 = vadd.f32 %v2158, %v2128
        %v2160 = vadd.f32 %v2159, %v2129
        %v2161 = vadd.f32 %v2160, %v2130
        %v2162 = vadd.f32 %v2161, %v2131
        %v2163 = vadd.f32 %v2162, %v2132
        %v2164 = vadd.f32 %v2163, %v2133
        %v2165 = vadd.f32 %v2164, %v2134
        %v2166 = vadd.f32 %v2165, %v2135
        %v2167 = vadd.f32 %v2166, %v2136
        %v2168 = vadd.f32 %v2167, %v2137
        %v2169 = vadd.f32 %v2168, %v2138
        %v2170 = vadd.f32 %v2169, %v2139
        %v2171 = vadd.f32 %v2170, %v2140
        %v2172 = vadd.f32 %v2171, %v2141
        %v2173 = vadd.f32 %v2172, %v2142
        %v2174 = vadd.f32 %v2173, %v2143
        %v2175 = vadd.f32 %v2174, %v2144
        %v2176 = vadd.f32 %v2175, %v2145
        %v2177 = vadd.f32 %v2176, %v2146
        %v2178 = vadd.f32 %v2177, %v2147
        %v2179 = vadd.f32 %v2178, %v2148
        %v2180 = vadd.f32 %v2179, %v2149
        %v2181 = vadd.f32 %v2180, %v2150
        %v2182 = vadd.f32 %v2181, %v2151
        %v2183 = vadd.f32 %v2182, %v2152
        %v2184 = vadd.f32 %v2183, %v2153
        %v2185 = vadd.f32 %v2184, %v2154
        %v2186 = vrot.slane %v2185, 4
        %v2187 = vadd.f32 %v2185, %v2186
        %v2188 = vrot.slane %v2187, 2
        %v2189 = vadd.f32 %v2187, %v2188
        %v2190 = vrot.slane %v2189, 1
        %v2191 = vadd.f32 %v2189, %v2190
        %v2192 = vld [vmem:[%s3] sm:$0xff]
        %v2193 = vld [vmem:[%s3 + $0x8] sm:$0xff]
        %v2194 = vld [vmem:[%s3 + $0x10] sm:$0xff]
        %v2195 = vld [vmem:[%s3 + $0x18] sm:$0xff]
        %v2196 = vld [vmem:[%s3 + $0x20] sm:$0xff]
        %v2197 = vld [vmem:[%s3 + $0x28] sm:$0xff]
        %v2198 = vld [vmem:[%s3 + $0x30] sm:$0xff]
        %v2199 = vld [vmem:[%s3 + $0x38] sm:$0xff]
        %v2200 = vld [vmem:[%s3 + $0x40] sm:$0xff]
        %v2201 = vld [vmem:[%s3 + $0x48] sm:$0xff]
        %v2202 = vld [vmem:[%s3 + $0x50] sm:$0xff]
        %v2203 = vld [vmem:[%s3 + $0x58] sm:$0xff]
        %v2204 = vld [vmem:[%s3 + $0x60] sm:$0xff]
        %v2205 = vld [vmem:[%s3 + $0x68] sm:$0xff]
        %v2206 = vld [vmem:[%s3 + $0x70] sm:$0xff]
        %v2207 = vld [vmem:[%s3 + $0x78] sm:$0xff]
        %v2208 = vld [vmem:[%s4] sm:$0x1]
        %2209 = vmatprep.subr.mxu0 0.0
        %2210 = vmatpush1.msra.mxu0 %v2192
        %2211 = vmatprep.subr.mxu0 0.0
        %2212 = vmatpush1.msra.mxu0 %v2193
        %2213 = vmatprep.subr.mxu0 0.0
        %2214 = vmatpush1.msra.mxu0 %v2194
        %2215 = vmatprep.subr.mxu0 0.0
        %2216 = vmatpush1.msra.mxu0 %v2195
        %2217 = vmatprep.subr.mxu0 0.0
        %2218 = vmatpush1.msra.mxu0 %v2196
        %2219 = vmatprep.subr.mxu0 0.0
        %2220 = vmatpush1.msra.mxu0 %v2197
        %2221 = vmatprep.subr.mxu0 0.0
        %2222 = vmatpush1.msra.mxu0 %v2198
        %2223 = vmatprep.subr.mxu0 0.0
        %2224 = vmatpush1.msra.mxu0 %v2199
        %2225 = vmatprep.subr.mxu0 0.0
        %2226 = vmatpush1.msra.mxu0 %v2200
        %2227 = vmatprep.subr.mxu0 0.0
        %2228 = vmatpush1.msra.mxu0 %v2201
        %2229 = vmatprep.subr.mxu0 0.0
        %2230 = vmatpush1.msra.mxu0 %v2202
        %2231 = vmatprep.subr.mxu0 0.0
        %2232 = vmatpush1.msra.mxu0 %v2203
        %2233 = vmatprep.subr.mxu0 0.0
        %2234 = vmatpush1.msra.mxu0 %v2204
        %2235 = vmatprep.subr.mxu0 0.0
        %2236 = vmatpush1.msra.mxu0 %v2205
        %2237 = vmatprep.subr.mxu0 0.0
        %2238 = vmatpush1.msra.mxu0 %v2206
        %2239 = vmatprep.subr.mxu0 0.0
        %2240 = vmatpush1.msra.mxu0 %v2207
        %2241 = vmatprep.subr.mxu0 0.0
        %2242 = vmatpush1.msra.mxu0 0.0
        %2243 = vmatprep.subr.mxu0 0.0
        %2244 = vmatpush1.msra.mxu0 0.0
        %2245 = vmatprep.subr.mxu0 0.0
        %2246 = vmatpush1.msra.mxu0 0.0
        %2247 = vmatprep.subr.mxu0 0.0
        %2248 = vmatpush1.msra.mxu0 0.0
        %2249 = vmatprep.subr.mxu0 0.0
        %2250 = vmatpush1.msra.mxu0 0.0
        %2251 = vmatprep.subr.mxu0 0.0
        %2252 = vmatpush1.msra.mxu0 0.0
        %2253 = vmatprep.subr.mxu0 0.0
        %2254 = vmatpush1.msra.mxu0 0.0
        %2255 = vmatprep.subr.mxu0 0.0
        %2256 = vmatpush1.msra.mxu0 0.0
        %2257 = vmatprep.subr.mxu0 0.0
        %2258 = vmatpush1.msra.mxu0 0.0
        %2259 = vmatprep.subr.mxu0 0.0
        %2260 = vmatpush1.msra.mxu0 0.0
        %2261 = vmatprep.subr.mxu0 0.0
        %2262 = vmatpush1.msra.mxu0 0.0
        %2263 = vmatprep.subr.mxu0 0.0
        %2264 = vmatpush1.msra.mxu0 0.0
        %2265 = vmatprep.subr.mxu0 0.0
        %2266 = vmatpush1.msra.mxu0 0.0
        %2267 = vmatprep.subr.mxu0 0.0
        %2268 = vmatpush1.msra.mxu0 0.0
        %2269 = vmatprep.subr.mxu0 0.0
        %2270 = vmatpush1.msra.mxu0 0.0
        %2271 = vmatprep.subr.mxu0 0.0
        %2272 = vmatpush1.msra.mxu0 0.0
        %2273 = vmatprep.mubr.f32.mxu0 0.0
        %2274 = vmatmul.mubr.f32.gmra.mrb[0].mxu0 %v2191
        %v2275 = vpop.f32.mrb[0].mxu0
        %v2276 = vadd.f32 %v2208, %v2275
        %v2277 = vpop.f32.mrb[0].mxu0
        %2278 = vdwg.mxu0
        %2279 = vst [vmem:[%s216] sm:$0x1] %v2276
        %s2280 = sand.u32 %s137, 1
        %s2281 = scalar_lea.sflag [#allocation4], %s2280
        %s2282 = sand.u32 %s137, 1
        %s2283 = scalar_lea.vmem [#allocation3], %s2282
        // Predicated region
        $region41: #{tpu_custom_call.1} parent=39 // pred_check
          %p2284 = pneg %p147
        $region42: #{tpu_custom_call.1} parent=39 // pred_check_branch
          %2286 = sbr.rel (%p2284) target = $region44
        $region43: #{tpu_custom_call.1} parent=39 // pred_region
          %s2288 = ssub.s32 16, 16
          %2289 = vsyncadd %s2281, %s2288
          %s2290 = smul.addr %s19, 16
          %s2291 = scalar_lea.hbm %s5, %s2290
          %s2293 = sshll.u32 %s2283, 4
          %s2294 = int_to_ptr.vmem [resolvable:$true] %s2293
          %2296 = dma.vmem_to_hbm [thread:$0]  %s2294, 16, %s2291, %s2281
        $region44: #{tpu_custom_call.1} parent=39 // pred_fallthru
          _
      $region40: #{tpu_custom_call.1} parent=5 // pred_fallthru
        _
      %p2297 = scmp.le.s32.totalorder 2, %s14
      // Predicated region
      $region45: #{tpu_custom_call.1} parent=5 // pred_check
        %p2298 = pneg %p2297
      $region46: #{tpu_custom_call.1} parent=5 // pred_check_branch
        %2300 = sbr.rel (%p2298) target = $region48
      $region47: #{tpu_custom_call.1} parent=5 // pred_region
        %s2301 = ssub.s32 %s14, 2
        // Predicated region
        $region49: #{tpu_custom_call.1} parent=47 // pred_check
          %p2302 = pneg %p153
        $region50: #{tpu_custom_call.1} parent=47 // pred_check_branch
          %2304 = sbr.rel (%p2302) target = $region52
        $region51: #{tpu_custom_call.1} parent=47 // pred_region
          %s2305 = sand.u32 %s138, 1
          %s2306 = scalar_lea.sflag [#allocation4], %s2305
          %s2307 = sand.u32 %s138, 1
          %s2308 = scalar_lea.vmem [#allocation3], %s2307
          %2309 = dma.done %s2306, 16
        $region52: #{tpu_custom_call.1} parent=47 // pred_fallthru
          _
      $region48: #{tpu_custom_call.1} parent=5 // pred_fallthru
        _
    $region6: #{tpu_custom_call.1} parent=1 // loop_footer
      %s18 = sadd.s32 1, %s14
    $region7: #{tpu_custom_call.1} parent=1 // loop_footer_branch
      %13 = sbr.rel target = $region3
    $region8: #{tpu_custom_call.1} parent=1 // loop_exit
      _
    %2310 = vsyncpa [#allocation4], 1
    %s2311 = scalar_lea.sflag [#allocation4], 1
    %2312 = vsyncpa %s2311, 1

</llo_original>
